<compile_context>
chip_gen: v6e
topology: v6e:2x2x1
jax: 0.10.0
libtpu: 0.0.40
codegen_flags: <defaults>
</compile_context>

<pallas_src>
import functools

import jax
import jax.numpy as jnp
from jax import lax
from jax.experimental import pallas as pl
from jax.experimental.pallas import tpu as pltpu


# Head hidden sizes fixed by the module definition.
_H_PT, _H_CH, _H_MU, _H_SG = 128, 64, 64, 64
_H1 = _H_PT + _H_CH + _H_MU + _H_SG          # 320 used lanes
_H1_PAD = 384                                 # padded to 3 * 128 lanes


def _round_up(x, m):
    return (x + m - 1) // m * m


def _default_prefer_even_steps():
    """True only on v7x-class chips (2 TensorCores/chip -> megacore balance)."""
    try:
        kind = jax.devices()[0].device_kind.lower()
    except Exception:
        return False
    return "v7" in kind


def _pick_batch_tile(B, max_tile=1024, prefer_even_steps=False):
    """Choose a multiple-of-8 batch tile.

    * B not a multiple of 8 (or tiny): one tile covering the whole batch.
    * Single-TC chips (v5e/v6e): one tile as large as possible (<= max_tile);
      weights are grid-invariant so extra grid steps are pure per-step overhead.
    * v7x (prefer_even_steps=True): prefer divisors giving an EVEN step count so
      both TensorCores get equal work under dimension_semantics=("parallel",).
    """
    if B <= 8 or B % 8 != 0:
        return B
    if B <= max_tile and not prefer_even_steps:
        return B
    cap = min(max_tile, B)
    cap -= cap % 8
    best = None
    best_even = None
    for t in range(cap, 63, -8):            # don't accept pathologically small tiles
        if B % t == 0:
            steps = B // t
            if best is None:
                best = t
            if steps % 2 == 0 and best_even is None:
                best_even = t
            if best_even is not None:
                break
    if prefer_even_steps and best_even is not None:
        return best_even
    if best is not None:
        return best
    return B


# ---------------------------------------------------------------------------
# Pallas kernel: full Actor forward for one batch tile
# ---------------------------------------------------------------------------
def actor_kernel(x_ref, w1_ref, w2_ref, w3_ref, wh1_ref, wh2_ref, bias_ref,
                 out_ref, *, pmax, num_points, num_channels, out_lanes):
    f32 = jnp.float32
    x = x_ref[...]

    # ---- base: Linear(ns_pad, 256) -> LayerNorm -> ReLU
    h = jnp.dot(x, w1_ref[...], preferred_element_type=f32) + bias_ref[0:1, 0:256]
    mean = jnp.mean(h, axis=-1, keepdims=True)
    hc = h - mean
    var = jnp.mean(hc * hc, axis=-1, keepdims=True)           # two-pass: robust to cancellation
    h = hc * lax.rsqrt(var + 1e-5)
    h = h * bias_ref[1:2, 0:256] + bias_ref[2:3, 0:256]        # LN gamma / beta
    h = jnp.maximum(h, 0.0)

    # ---- Linear(256, 256) -> ReLU
    h = jnp.dot(h, w2_ref[...], preferred_element_type=f32) + bias_ref[3:4, 0:256]
    h = jnp.maximum(h, 0.0)

    # ---- Linear(256, 128) -> ReLU
    code = jnp.dot(h, w3_ref[...], preferred_element_type=f32) + bias_ref[4:5, 0:128]
    code = jnp.maximum(code, 0.0)

    # ---- fused first head layer: (128 -> 384)  [pt 128 | ch 64 | mu 64 | sg 64 | pad 64]
    hh = jnp.dot(code, wh1_ref[...], preferred_element_type=f32) + bias_ref[5:6, 0:_H1_PAD]
    hh = jnp.maximum(hh, 0.0)

    # ---- fused second head layer: block-diagonal (384 -> out_lanes)
    z = jnp.dot(hh, wh2_ref[...], preferred_element_type=f32) + bias_ref[6:7, 0:out_lanes]

    # lane layout of z: [pts (num_points) | ch (num_channels) | mu (1) | sigma (1) | 0-pad]
    lane = lax.broadcasted_iota(jnp.int32, z.shape, 1)
    i_mu = num_points + num_channels
    i_sg = i_mu + 1
    pts_mask = lane < num_points
    ch_mask = (lane >= num_points) & (lane < i_mu)
    sm_mask = lane < i_mu
    mu_mask = lane == i_mu
    sg_mask = lane == i_sg

    # --- fused epilogue: ONE exp, ONE log, ONE divide for both softmaxes,
    #     the sigmoid (mu lane) and the stable softplus (sigma lane).
    neg = f32(-1e30)
    m_pts = jnp.max(jnp.where(pts_mask, z, neg), axis=-1, keepdims=True)
    m_ch = jnp.max(jnp.where(ch_mask, z, neg), axis=-1, keepdims=True)
    relu_z = jnp.maximum(z, 0.0)
    # softmax lanes subtract their group max; every other lane uses 2*relu(z)
    # so that e == exp(-|z|) there (shared by sigmoid and softplus).
    m_lane = jnp.where(pts_mask, m_pts, jnp.where(ch_mask, m_ch, 2.0 * relu_z))
    e = jnp.exp(z - m_lane)                                    # single full-width EUP pass

    s_pts = jnp.sum(jnp.where(pts_mask, e, 0.0), axis=-1, keepdims=True)
    s_ch = jnp.sum(jnp.where(ch_mask, e, 0.0), axis=-1, keepdims=True)

    # softplus(z) = relu(z) + log(1 + exp(-|z|));  e in (0, 1] so log arg in (1, 2]
    softplus = relu_z + jnp.log(1.0 + e)
    # TODO(synk): for out_lanes > 128 the log could be restricted to the single
    # 128-lane tile holding the sigma lane instead of running full width.

    num = jnp.where(sm_mask, e,
          jnp.where(mu_mask, jnp.where(z >= 0.0, 1.0, e),
          jnp.where(sg_mask, softplus, 0.0)))
    den = jnp.where(pts_mask, s_pts,
          jnp.where(ch_mask, s_ch,
          jnp.where(mu_mask, 1.0 + e, 1.0)))
    y = num / den                                              # single full-width divide

    out_ref[...] = jnp.where(mu_mask, y * (pmax - 1e-10) + 1e-10, y)


# ---------------------------------------------------------------------------
# Parameter packing (24 arrays -> 6 lane-padded, grid-invariant buffers)
# ---------------------------------------------------------------------------
def pack_actor_params(params, num_points, num_channels):
    (w1, b1, ln_g, ln_b, w2, b2, w3, b3,
     wp1, bp1, wp2, bp2, wc1, bc1, wc2, bc2,
     wm1, bm1, wm2, bm2, ws1, bs1, ws2, bs2) = params

    f32 = jnp.float32
    num_states = w1.shape[0]
    ns_pad = max(128, _round_up(num_states, 128))
    out_used = num_points + num_channels + 2
    out_lanes = max(128, _round_up(out_used, 128))
    bias_w = max(_H1_PAD, out_lanes)

    # zero-pad the contraction dim of w1 to a lane-dense multiple of 128
    w1p = jnp.zeros((ns_pad, 256), f32).at[:num_states, :].set(w1.astype(f32))
    w2 = jnp.asarray(w2, f32)
    w3 = jnp.asarray(w3, f32)

    wh1 = jnp.zeros((128, _H1_PAD), f32)
    wh1 = wh1.at[:, 0:_H_PT].set(wp1)
    wh1 = wh1.at[:, _H_PT:_H_PT + _H_CH].set(wc1)
    wh1 = wh1.at[:, _H_PT + _H_CH:_H_PT + _H_CH + _H_MU].set(wm1)
    wh1 = wh1.at[:, _H_PT + _H_CH + _H_MU:_H1].set(ws1)

    i_mu = num_points + num_channels
    wh2 = jnp.zeros((_H1_PAD, out_lanes), f32)
    wh2 = wh2.at[0:_H_PT, 0:num_points].set(wp2)
    wh2 = wh2.at[_H_PT:_H_PT + _H_CH, num_points:i_mu].set(wc2)
    wh2 = wh2.at[_H_PT + _H_CH:_H_PT + _H_CH + _H_MU, i_mu:i_mu + 1].set(wm2)
    wh2 = wh2.at[_H_PT + _H_CH + _H_MU:_H1, i_mu + 1:i_mu + 2].set(ws2)

    def row(*vs):
        v = jnp.concatenate([jnp.asarray(a, f32).reshape(-1) for a in vs])
        return jnp.pad(v, (0, bias_w - v.shape[0]))

    bias = jnp.stack([
        row(b1), row(ln_g), row(ln_b), row(b2), row(b3),
        row(bp1, bc1, bm1, bs1),          # fused head-1 bias (320 used lanes)
        row(bp2, bc2, bm2, bs2),          # fused head-2 bias (out_used lanes)
        jnp.zeros((bias_w,), f32),
    ])                                    # (8, bias_w)

    return (w1p, w2, w3, wh1, wh2, bias), out_lanes, ns_pad


# ---------------------------------------------------------------------------
# Wrapper
# ---------------------------------------------------------------------------
def actor_forward(x, params, pmax, *, batch_tile=None, prefer_even_steps=None):
    B, num_states = x.shape
    num_points = params[10].shape[1]      # wp2: (128, num_points)
    num_channels = params[14].shape[1]    # wc2: (64, num_channels)

    (w1p, w2, w3, wh1, wh2, bias), out_lanes, ns_pad = pack_actor_params(
        params, num_points, num_channels)

    if prefer_even_steps is None:
        prefer_even_steps = _default_prefer_even_steps()
    if batch_tile is None:
        batch_tile = _pick_batch_tile(B, prefer_even_steps=prefer_even_steps)
    assert B % batch_tile == 0

    x = x.astype(jnp.float32)
    if ns_pad != num_states:
        x = jnp.pad(x, ((0, 0), (0, ns_pad - num_states)))

    in_specs = [
        pl.BlockSpec((batch_tile, ns_pad), lambda i: (i, 0)),
        pl.BlockSpec(w1p.shape, lambda i: (0, 0)),
        pl.BlockSpec(w2.shape, lambda i: (0, 0)),
        pl.BlockSpec(w3.shape, lambda i: (0, 0)),
        pl.BlockSpec(wh1.shape, lambda i: (0, 0)),
        pl.BlockSpec(wh2.shape, lambda i: (0, 0)),
        pl.BlockSpec(bias.shape, lambda i: (0, 0)),
    ]
    out_specs = pl.BlockSpec((batch_tile, out_lanes), lambda i: (i, 0))
    out_shape = jax.ShapeDtypeStruct((B, out_lanes), jnp.float32)

    fn = pl.pallas_call(
        functools.partial(actor_kernel, pmax=float(pmax),
                          num_points=num_points, num_channels=num_channels,
                          out_lanes=out_lanes),
        grid_spec=pltpu.PrefetchScalarGridSpec(
            num_scalar_prefetch=0,
            grid=(B // batch_tile,),
            in_specs=in_specs,
            out_specs=out_specs),
        out_shape=out_shape,
        compiler_params=pltpu.CompilerParams(
            dimension_semantics=("parallel",),
            vmem_limit_bytes=48 * 1024 * 1024),
    )
    out = fn(x, w1p, w2, w3, wh1, wh2, bias)

    i_mu = num_points + num_channels
    pts = out[:, :num_points]
    ch = out[:, num_points:i_mu]
    mu = out[:, i_mu:i_mu + 1]
    sig = out[:, i_mu + 1:i_mu + 2]
    return pts, ch, (mu, sig)


# ---------------------------------------------------------------------------
# Deterministic parameter init (PyTorch-style uniform(-1/sqrt(fan_in), ...))
# ---------------------------------------------------------------------------
def init_params(key, num_states, num_points, num_channels):
    def linear(key, fan_in, fan_out):
        k1, k2 = jax.random.split(key)
        bound = 1.0 / jnp.sqrt(fan_in)
        w = jax.random.uniform(k1, (fan_in, fan_out), jnp.float32, -bound, bound)
        b = jax.random.uniform(k2, (1, fan_out), jnp.float32, -bound, bound)
        return w, b

    keys = jax.random.split(key, 12)
    w1, b1 = linear(keys[0], num_states, 256)
    ln_g = jnp.ones((1, 256), jnp.float32)
    ln_b = jnp.zeros((1, 256), jnp.float32)
    w2, b2 = linear(keys[1], 256, 256)
    w3, b3 = linear(keys[2], 256, 128)
    wp1, bp1 = linear(keys[3], 128, 128)
    wp2, bp2 = linear(keys[4], 128, num_points)
    wc1, bc1 = linear(keys[5], 128, 64)
    wc2, bc2 = linear(keys[6], 64, num_channels)
    wm1, bm1 = linear(keys[7], 128, 64)
    wm2, bm2 = linear(keys[8], 64, 1)
    ws1, bs1 = linear(keys[9], 128, 64)
    ws2, bs2 = linear(keys[10], 64, 1)
    return (w1, b1, ln_g, ln_b, w2, b2, w3, b3,
            wp1, bp1, wp2, bp2, wc1, bc1, wc2, bc2,
            wm1, bm1, wm2, bm2, ws1, bs1, ws2, bs2)


# Pure-JAX reference for correctness check
def actor_reference(x, params, pmax):
    (w1, b1, ln_g, ln_b, w2, b2, w3, b3,
     wp1, bp1, wp2, bp2, wc1, bc1, wc2, bc2,
     wm1, bm1, wm2, bm2, ws1, bs1, ws2, bs2) = params
    h = x @ w1 + b1
    mean = jnp.mean(h, axis=-1, keepdims=True)
    var = jnp.mean((h - mean) ** 2, axis=-1, keepdims=True)
    h = (h - mean) / jnp.sqrt(var + 1e-5) * ln_g + ln_b
    h = jax.nn.relu(h)
    h = jax.nn.relu(h @ w2 + b2)
    code = jax.nn.relu(h @ w3 + b3)
    pts = jax.nn.softmax(jax.nn.relu(code @ wp1 + bp1) @ wp2 + bp2, axis=-1)
    ch = jax.nn.softmax(jax.nn.relu(code @ wc1 + bc1) @ wc2 + bc2, axis=-1)
    mu = jax.nn.sigmoid(jax.nn.relu(code @ wm1 + bm1) @ wm2 + bm2) * (pmax - 1e-10) + 1e-10
    sig = jax.nn.softplus(jax.nn.relu(code @ ws1 + bs1) @ ws2 + bs2)
    return pts, ch, mu, sig


if __name__ == "__main__":
    batch = 8
    num_states = 32
    num_points = 8
    num_channels = 4
    pmax = 2.0

    key = jax.random.PRNGKey(0)
    kx, kp = jax.random.split(key)
    x = jax.random.normal(kx, (batch, num_states), jnp.float32)
    params = init_params(kp, num_states, num_points, num_channels)

    pts, ch, (mu, sig) = actor_forward(x, params, pmax)
    jax.block_until_ready((pts, ch, mu, sig))

    r_pts, r_ch, r_mu, r_sig = actor_reference(x, params, pmax)
    import numpy as np
    np.testing.assert_allclose(np.asarray(pts), np.asarray(r_pts), rtol=1e-5, atol=1e-5)
    np.testing.assert_allclose(np.asarray(ch), np.asarray(r_ch), rtol=1e-5, atol=1e-5)
    np.testing.assert_allclose(np.asarray(mu), np.asarray(r_mu), rtol=1e-5, atol=1e-5)
    np.testing.assert_allclose(np.asarray(sig), np.asarray(r_sig), rtol=1e-5, atol=1e-5)

    print("KERNEL_OK")
</pallas_src>

<mosaic_0001>
module attributes {stable_mosaic.version = 11 : i64} {
  func.func @actor_kernel(%arg0: i32, %arg1: memref<8x128xf32, #tpu.memory_space<vmem>>, %arg2: memref<128x256xf32, #tpu.memory_space<vmem>>, %arg3: memref<256x256xf32, #tpu.memory_space<vmem>>, %arg4: memref<256x128xf32, #tpu.memory_space<vmem>>, %arg5: memref<128x384xf32, #tpu.memory_space<vmem>>, %arg6: memref<384x128xf32, #tpu.memory_space<vmem>>, %arg7: memref<8x384xf32, #tpu.memory_space<vmem>>, %arg8: memref<8x128xf32, #tpu.memory_space<vmem>>) attributes {dimension_semantics = [#tpu.dimension_semantics<parallel>], iteration_bounds = array<i64: 1>, scalar_prefetch = 0 : i64, scratch_operands = 0 : i64, tpu.core_type = #tpu.core_type<tc>, window_params = [{transform_indices = @transform_0, window_bounds = array<i64: 8, 128>}, {pipeline_mode = #tpu.pipeline_mode<synchronous>, transform_indices = @transform_1, window_bounds = array<i64: 128, 256>}, {pipeline_mode = #tpu.pipeline_mode<synchronous>, transform_indices = @transform_2, window_bounds = array<i64: 256, 256>}, {pipeline_mode = #tpu.pipeline_mode<synchronous>, transform_indices = @transform_3, window_bounds = array<i64: 256, 128>}, {pipeline_mode = #tpu.pipeline_mode<synchronous>, transform_indices = @transform_4, window_bounds = array<i64: 128, 384>}, {pipeline_mode = #tpu.pipeline_mode<synchronous>, transform_indices = @transform_5, window_bounds = array<i64: 384, 128>}, {pipeline_mode = #tpu.pipeline_mode<synchronous>, transform_indices = @transform_6, window_bounds = array<i64: 8, 384>}, {transform_indices = @transform_7, window_bounds = array<i64: 8, 128>}]} {
    %c0 = arith.constant 0 : index
    %c0_0 = arith.constant 0 : index
    %0 = vector.load %arg1[%c0, %c0_0] : memref<8x128xf32, #tpu.memory_space<vmem>>, vector<8x128xf32>
    %c0_1 = arith.constant 0 : index
    %c0_2 = arith.constant 0 : index
    %1 = vector.load %arg2[%c0_1, %c0_2] : memref<128x256xf32, #tpu.memory_space<vmem>>, vector<128x256xf32>
    %cst = arith.constant dense<0.000000e+00> : vector<8x256xf32>
    %2 = tpu.matmul %0, %1, %cst {dimension_numbers = #tpu.dot_dimension_numbers<[1], [0], [0], [1], [0, 0, 1, 1], [], []>} : vector<8x128xf32>, vector<128x256xf32>, vector<8x256xf32> -> vector<8x256xf32>
    %c0_3 = arith.constant 0 : index
    %c0_4 = arith.constant 0 : index
    %3 = vector.load %arg7[%c0_3, %c0_4] : memref<8x384xf32, #tpu.memory_space<vmem>>, vector<1x256xf32>
    %4 = vector.broadcast %3 : vector<1x256xf32> to vector<8x256xf32>
    %5 = arith.addf %2, %4 : vector<8x256xf32>
    %cst_5 = arith.constant dense<0.000000e+00> : vector<8xf32>
    %6 = vector.multi_reduction <add>, %5, %cst_5 [1] : vector<8x256xf32> to vector<8xf32>
    %7 = vector.shape_cast %6 : vector<8xf32> to vector<8x1xf32>
    %cst_6 = arith.constant 2.560000e+02 : f32
    %8 = vector.broadcast %cst_6 : f32 to vector<8x1xf32>
    %9 = arith.divf %7, %8 : vector<8x1xf32>
    %10 = vector.broadcast %9 : vector<8x1xf32> to vector<8x256xf32>
    %11 = arith.subf %5, %10 : vector<8x256xf32>
    %12 = arith.mulf %11, %11 : vector<8x256xf32>
    %cst_7 = arith.constant dense<0.000000e+00> : vector<8xf32>
    %13 = vector.multi_reduction <add>, %12, %cst_7 [1] : vector<8x256xf32> to vector<8xf32>
    %14 = vector.shape_cast %13 : vector<8xf32> to vector<8x1xf32>
    %cst_8 = arith.constant 2.560000e+02 : f32
    %15 = vector.broadcast %cst_8 : f32 to vector<8x1xf32>
    %16 = arith.divf %14, %15 : vector<8x1xf32>
    %cst_9 = arith.constant 9.99999974E-6 : f32
    %17 = vector.broadcast %cst_9 : f32 to vector<8x1xf32>
    %18 = arith.addf %16, %17 : vector<8x1xf32>
    %19 = math.rsqrt %18 : vector<8x1xf32>
    %20 = vector.broadcast %19 : vector<8x1xf32> to vector<8x256xf32>
    %21 = arith.mulf %11, %20 : vector<8x256xf32>
    %c1 = arith.constant 1 : index
    %c0_10 = arith.constant 0 : index
    %22 = vector.load %arg7[%c1, %c0_10] : memref<8x384xf32, #tpu.memory_space<vmem>>, vector<1x256xf32>
    %23 = vector.broadcast %22 : vector<1x256xf32> to vector<8x256xf32>
    %24 = arith.mulf %21, %23 : vector<8x256xf32>
    %c2 = arith.constant 2 : index
    %c0_11 = arith.constant 0 : index
    %25 = vector.load %arg7[%c2, %c0_11] : memref<8x384xf32, #tpu.memory_space<vmem>>, vector<1x256xf32>
    %26 = vector.broadcast %25 : vector<1x256xf32> to vector<8x256xf32>
    %27 = arith.addf %24, %26 : vector<8x256xf32>
    %cst_12 = arith.constant 0.000000e+00 : f32
    %28 = vector.broadcast %cst_12 : f32 to vector<8x256xf32>
    %29 = arith.maximumf %27, %28 : vector<8x256xf32>
    %c0_13 = arith.constant 0 : index
    %c0_14 = arith.constant 0 : index
    %30 = vector.load %arg3[%c0_13, %c0_14] : memref<256x256xf32, #tpu.memory_space<vmem>>, vector<256x256xf32>
    %cst_15 = arith.constant dense<0.000000e+00> : vector<8x256xf32>
    %31 = tpu.matmul %29, %30, %cst_15 {dimension_numbers = #tpu.dot_dimension_numbers<[1], [0], [0], [1], [0, 0, 1, 1], [], []>} : vector<8x256xf32>, vector<256x256xf32>, vector<8x256xf32> -> vector<8x256xf32>
    %c3 = arith.constant 3 : index
    %c0_16 = arith.constant 0 : index
    %32 = vector.load %arg7[%c3, %c0_16] : memref<8x384xf32, #tpu.memory_space<vmem>>, vector<1x256xf32>
    %33 = vector.broadcast %32 : vector<1x256xf32> to vector<8x256xf32>
    %34 = arith.addf %31, %33 : vector<8x256xf32>
    %cst_17 = arith.constant 0.000000e+00 : f32
    %35 = vector.broadcast %cst_17 : f32 to vector<8x256xf32>
    %36 = arith.maximumf %34, %35 : vector<8x256xf32>
    %c0_18 = arith.constant 0 : index
    %c0_19 = arith.constant 0 : index
    %37 = vector.load %arg4[%c0_18, %c0_19] : memref<256x128xf32, #tpu.memory_space<vmem>>, vector<256x128xf32>
    %cst_20 = arith.constant dense<0.000000e+00> : vector<8x128xf32>
    %38 = tpu.matmul %36, %37, %cst_20 {dimension_numbers = #tpu.dot_dimension_numbers<[1], [0], [0], [1], [0, 0, 1, 1], [], []>} : vector<8x256xf32>, vector<256x128xf32>, vector<8x128xf32> -> vector<8x128xf32>
    %c4 = arith.constant 4 : index
    %c0_21 = arith.constant 0 : index
    %39 = vector.load %arg7[%c4, %c0_21] : memref<8x384xf32, #tpu.memory_space<vmem>>, vector<1x128xf32>
    %40 = vector.broadcast %39 : vector<1x128xf32> to vector<8x128xf32>
    %41 = arith.addf %38, %40 : vector<8x128xf32>
    %cst_22 = arith.constant 0.000000e+00 : f32
    %42 = vector.broadcast %cst_22 : f32 to vector<8x128xf32>
    %43 = arith.maximumf %41, %42 : vector<8x128xf32>
    %c0_23 = arith.constant 0 : index
    %c0_24 = arith.constant 0 : index
    %44 = vector.load %arg5[%c0_23, %c0_24] : memref<128x384xf32, #tpu.memory_space<vmem>>, vector<128x384xf32>
    %cst_25 = arith.constant dense<0.000000e+00> : vector<8x384xf32>
    %45 = tpu.matmul %43, %44, %cst_25 {dimension_numbers = #tpu.dot_dimension_numbers<[1], [0], [0], [1], [0, 0, 1, 1], [], []>} : vector<8x128xf32>, vector<128x384xf32>, vector<8x384xf32> -> vector<8x384xf32>
    %c5 = arith.constant 5 : index
    %c0_26 = arith.constant 0 : index
    %46 = vector.load %arg7[%c5, %c0_26] : memref<8x384xf32, #tpu.memory_space<vmem>>, vector<1x384xf32>
    %47 = vector.broadcast %46 : vector<1x384xf32> to vector<8x384xf32>
    %48 = arith.addf %45, %47 : vector<8x384xf32>
    %cst_27 = arith.constant 0.000000e+00 : f32
    %49 = vector.broadcast %cst_27 : f32 to vector<8x384xf32>
    %50 = arith.maximumf %48, %49 : vector<8x384xf32>
    %c0_28 = arith.constant 0 : index
    %c0_29 = arith.constant 0 : index
    %51 = vector.load %arg6[%c0_28, %c0_29] : memref<384x128xf32, #tpu.memory_space<vmem>>, vector<384x128xf32>
    %cst_30 = arith.constant dense<0.000000e+00> : vector<8x128xf32>
    %52 = tpu.matmul %50, %51, %cst_30 {dimension_numbers = #tpu.dot_dimension_numbers<[1], [0], [0], [1], [0, 0, 1, 1], [], []>} : vector<8x384xf32>, vector<384x128xf32>, vector<8x128xf32> -> vector<8x128xf32>
    %c6 = arith.constant 6 : index
    %c0_31 = arith.constant 0 : index
    %53 = vector.load %arg7[%c6, %c0_31] : memref<8x384xf32, #tpu.memory_space<vmem>>, vector<1x128xf32>
    %54 = vector.broadcast %53 : vector<1x128xf32> to vector<8x128xf32>
    %55 = arith.addf %52, %54 : vector<8x128xf32>
    %56 = tpu.iota {dimensions = array<i32: 1>} : vector<8x128xi32>
    %c8_i32 = arith.constant 8 : i32
    %57 = vector.broadcast %c8_i32 : i32 to vector<8x128xi32>
    %58 = arith.cmpi slt, %56, %57 : vector<8x128xi32>
    %c8_i32_32 = arith.constant 8 : i32
    %59 = vector.broadcast %c8_i32_32 : i32 to vector<8x128xi32>
    %60 = arith.cmpi sge, %56, %59 : vector<8x128xi32>
    %c12_i32 = arith.constant 12 : i32
    %61 = vector.broadcast %c12_i32 : i32 to vector<8x128xi32>
    %62 = arith.cmpi slt, %56, %61 : vector<8x128xi32>
    %63 = arith.andi %60, %62 : vector<8x128xi1>
    %c12_i32_33 = arith.constant 12 : i32
    %64 = vector.broadcast %c12_i32_33 : i32 to vector<8x128xi32>
    %65 = arith.cmpi slt, %56, %64 : vector<8x128xi32>
    %c12_i32_34 = arith.constant 12 : i32
    %66 = vector.broadcast %c12_i32_34 : i32 to vector<8x128xi32>
    %67 = arith.cmpi eq, %56, %66 : vector<8x128xi32>
    %c13_i32 = arith.constant 13 : i32
    %68 = vector.broadcast %c13_i32 : i32 to vector<8x128xi32>
    %69 = arith.cmpi eq, %56, %68 : vector<8x128xi32>
    %cst_35 = arith.constant -1.000000e+30 : f32
    %70 = vector.broadcast %cst_35 : f32 to vector<8x128xf32>
    %71 = arith.select %58, %55, %70 : vector<8x128xi1>, vector<8x128xf32>
    %cst_36 = arith.constant dense<0xFF800000> : vector<8xf32>
    %72 = vector.multi_reduction <maximumf>, %71, %cst_36 [1] : vector<8x128xf32> to vector<8xf32>
    %73 = vector.shape_cast %72 : vector<8xf32> to vector<8x1xf32>
    %cst_37 = arith.constant -1.000000e+30 : f32
    %74 = vector.broadcast %cst_37 : f32 to vector<8x128xf32>
    %75 = arith.select %63, %55, %74 : vector<8x128xi1>, vector<8x128xf32>
    %cst_38 = arith.constant dense<0xFF800000> : vector<8xf32>
    %76 = vector.multi_reduction <maximumf>, %75, %cst_38 [1] : vector<8x128xf32> to vector<8xf32>
    %77 = vector.shape_cast %76 : vector<8xf32> to vector<8x1xf32>
    %cst_39 = arith.constant 0.000000e+00 : f32
    %78 = vector.broadcast %cst_39 : f32 to vector<8x128xf32>
    %79 = arith.maximumf %55, %78 : vector<8x128xf32>
    %cst_40 = arith.constant 2.000000e+00 : f32
    %80 = vector.broadcast %cst_40 : f32 to vector<8x128xf32>
    %81 = arith.mulf %80, %79 : vector<8x128xf32>
    %82 = vector.shape_cast %77 : vector<8x1xf32> to vector<8x1xf32>
    %83 = vector.broadcast %82 : vector<8x1xf32> to vector<8x128xf32>
    %84 = arith.select %63, %83, %81 : vector<8x128xi1>, vector<8x128xf32>
    %85 = vector.shape_cast %73 : vector<8x1xf32> to vector<8x1xf32>
    %86 = vector.broadcast %85 : vector<8x1xf32> to vector<8x128xf32>
    %87 = arith.select %58, %86, %84 : vector<8x128xi1>, vector<8x128xf32>
    %88 = arith.subf %55, %87 : vector<8x128xf32>
    %89 = math.exp %88 : vector<8x128xf32>
    %cst_41 = arith.constant 0.000000e+00 : f32
    %90 = vector.broadcast %cst_41 : f32 to vector<8x128xf32>
    %91 = arith.select %58, %89, %90 : vector<8x128xi1>, vector<8x128xf32>
    %cst_42 = arith.constant dense<0.000000e+00> : vector<8xf32>
    %92 = vector.multi_reduction <add>, %91, %cst_42 [1] : vector<8x128xf32> to vector<8xf32>
    %93 = vector.shape_cast %92 : vector<8xf32> to vector<8x1xf32>
    %cst_43 = arith.constant 0.000000e+00 : f32
    %94 = vector.broadcast %cst_43 : f32 to vector<8x128xf32>
    %95 = arith.select %63, %89, %94 : vector<8x128xi1>, vector<8x128xf32>
    %cst_44 = arith.constant dense<0.000000e+00> : vector<8xf32>
    %96 = vector.multi_reduction <add>, %95, %cst_44 [1] : vector<8x128xf32> to vector<8xf32>
    %97 = vector.shape_cast %96 : vector<8xf32> to vector<8x1xf32>
    %cst_45 = arith.constant 1.000000e+00 : f32
    %98 = vector.broadcast %cst_45 : f32 to vector<8x128xf32>
    %99 = arith.addf %98, %89 : vector<8x128xf32>
    %100 = math.log %99 : vector<8x128xf32>
    %101 = arith.addf %79, %100 : vector<8x128xf32>
    %cst_46 = arith.constant 0.000000e+00 : f32
    %102 = vector.broadcast %cst_46 : f32 to vector<8x128xf32>
    %103 = arith.cmpf oge, %55, %102 : vector<8x128xf32>
    %cst_47 = arith.constant 1.000000e+00 : f32
    %104 = vector.broadcast %cst_47 : f32 to vector<8x128xf32>
    %105 = arith.select %103, %104, %89 : vector<8x128xi1>, vector<8x128xf32>
    %cst_48 = arith.constant 0.000000e+00 : f32
    %106 = vector.broadcast %cst_48 : f32 to vector<8x128xf32>
    %107 = arith.select %69, %101, %106 : vector<8x128xi1>, vector<8x128xf32>
    %108 = arith.select %67, %105, %107 : vector<8x128xi1>, vector<8x128xf32>
    %109 = arith.select %65, %89, %108 : vector<8x128xi1>, vector<8x128xf32>
    %cst_49 = arith.constant 1.000000e+00 : f32
    %110 = vector.broadcast %cst_49 : f32 to vector<8x128xf32>
    %111 = arith.addf %110, %89 : vector<8x128xf32>
    %cst_50 = arith.constant 1.000000e+00 : f32
    %112 = vector.broadcast %cst_50 : f32 to vector<8x128xf32>
    %113 = arith.select %67, %111, %112 : vector<8x128xi1>, vector<8x128xf32>
    %114 = vector.shape_cast %97 : vector<8x1xf32> to vector<8x1xf32>
    %115 = vector.broadcast %114 : vector<8x1xf32> to vector<8x128xf32>
    %116 = arith.select %63, %115, %113 : vector<8x128xi1>, vector<8x128xf32>
    %117 = vector.shape_cast %93 : vector<8x1xf32> to vector<8x1xf32>
    %118 = vector.broadcast %117 : vector<8x1xf32> to vector<8x128xf32>
    %119 = arith.select %58, %118, %116 : vector<8x128xi1>, vector<8x128xf32>
    %120 = arith.divf %109, %119 : vector<8x128xf32>
    %cst_51 = arith.constant 2.000000e+00 : f32
    %121 = vector.broadcast %cst_51 : f32 to vector<8x128xf32>
    %122 = arith.mulf %120, %121 : vector<8x128xf32>
    %cst_52 = arith.constant 1.000000e-10 : f32
    %123 = vector.broadcast %cst_52 : f32 to vector<8x128xf32>
    %124 = arith.addf %122, %123 : vector<8x128xf32>
    %125 = arith.select %67, %124, %120 : vector<8x128xi1>, vector<8x128xf32>
    %c0_53 = arith.constant 0 : index
    %c0_54 = arith.constant 0 : index
    %126 = vector.load %arg8[%c0_53, %c0_54] : memref<8x128xf32, #tpu.memory_space<vmem>>, vector<8x128xf32>
    tpu.vector_store %arg8[%c0_53, %c0_54], %125 {strides = array<i32>} : memref<8x128xf32, #tpu.memory_space<vmem>>, vector<8x128xf32>,
    return
  }
  func.func @transform_0(%arg0: i32) -> (i32, i32) {
    %c0_i32 = arith.constant 0 : i32
    %c0_i32_0 = arith.constant 0 : i32
    return %arg0, %c0_i32 : i32, i32
  }
  func.func @transform_1(%arg0: i32) -> (i32, i32) {
    %c0_i32 = arith.constant 0 : i32
    %c0_i32_0 = arith.constant 0 : i32
    %c0_i32_1 = arith.constant 0 : i32
    return %c0_i32, %c0_i32_0 : i32, i32
  }
  func.func @transform_2(%arg0: i32) -> (i32, i32) {
    %c0_i32 = arith.constant 0 : i32
    %c0_i32_0 = arith.constant 0 : i32
    %c0_i32_1 = arith.constant 0 : i32
    return %c0_i32, %c0_i32_0 : i32, i32
  }
  func.func @transform_3(%arg0: i32) -> (i32, i32) {
    %c0_i32 = arith.constant 0 : i32
    %c0_i32_0 = arith.constant 0 : i32
    %c0_i32_1 = arith.constant 0 : i32
    return %c0_i32, %c0_i32_0 : i32, i32
  }
  func.func @transform_4(%arg0: i32) -> (i32, i32) {
    %c0_i32 = arith.constant 0 : i32
    %c0_i32_0 = arith.constant 0 : i32
    %c0_i32_1 = arith.constant 0 : i32
    return %c0_i32, %c0_i32_0 : i32, i32
  }
  func.func @transform_5(%arg0: i32) -> (i32, i32) {
    %c0_i32 = arith.constant 0 : i32
    %c0_i32_0 = arith.constant 0 : i32
    %c0_i32_1 = arith.constant 0 : i32
    return %c0_i32, %c0_i32_0 : i32, i32
  }
  func.func @transform_6(%arg0: i32) -> (i32, i32) {
    %c0_i32 = arith.constant 0 : i32
    %c0_i32_0 = arith.constant 0 : i32
    %c0_i32_1 = arith.constant 0 : i32
    return %c0_i32, %c0_i32_0 : i32, i32
  }
  func.func @transform_7(%arg0: i32) -> (i32, i32) {
    %c0_i32 = arith.constant 0 : i32
    %c0_i32_0 = arith.constant 0 : i32
    return %arg0, %c0_i32 : i32, i32
  }
}

</mosaic_0001>

<llo_original>
// kernel: tpu_custom_call.1
$region0: #{tpu_custom_call.1}
  #allocation0 [shape = 'u32[]', space=smem, size = 0x4, offset = 0x4, fixed_abs, tag = 'smem constant byte address 0x4 - core index']
  #allocation1 [shape = 'u32[144,128]{1,0:T(1,128)}', space=vmem, size = 0x12000, scoped, tag = 'internal scratch']
  %s0 = inlined_call_operand.hbm [shape: f32[8,128], index: 0, kind: input, shape index: {}]
  %s1 = inlined_call_operand.hbm [shape: f32[128,256], index: 1, kind: input, shape index: {}]
  %s2 = inlined_call_operand.hbm [shape: f32[256,256], index: 2, kind: input, shape index: {}]
  %s3 = inlined_call_operand.hbm [shape: f32[256,128], index: 3, kind: input, shape index: {}]
  %s4 = inlined_call_operand.hbm [shape: f32[128,384], index: 4, kind: input, shape index: {}]
  %s5 = inlined_call_operand.hbm [shape: f32[384,128], index: 5, kind: input, shape index: {}]
  %s6 = inlined_call_operand.hbm [shape: f32[8,384], index: 6, kind: input, shape index: {}]
  %s7 = inlined_call_operand.hbm [shape: f32[8,128], index: 7, kind: output, shape index: {}]
  %s8 = sld [smem:[#allocation0]]
  $region66: #{tpu_custom_call.1} parent=0
    _
  %s10 = ssub.s32 1, %s8
  %s11 = scalar_select 0, %s10, %s8
  $region1: #{tpu_custom_call.1} parent=0
    #allocation2 [shape = 'u8[4096]{0}', space=vmem, size = 0x1000, scoped, tag = 'input window, operand 0, single buffered']
    #allocation3 [shape = 's32[1]{0}', space=sflag, size = 0x4, scoped, tag = 'scoped memory for tpu_custom_call.1']
    #allocation4 [shape = 's32[1]{0}', space=sflag, size = 0x4, scoped, tag = 'scoped memory for tpu_custom_call.1']
    #allocation5 [shape = 'u8[131072]{0}', space=vmem, size = 0x20000, scoped, tag = 'input window, operand 1, single buffered']
    #allocation6 [shape = 's32[1]{0}', space=sflag, size = 0x4, scoped, tag = 'scoped memory for tpu_custom_call.1']
    #allocation7 [shape = 'u8[262144]{0}', space=vmem, size = 0x40000, scoped, tag = 'input window, operand 2, single buffered']
    #allocation8 [shape = 'u8[131072]{0}', space=vmem, size = 0x20000, scoped, tag = 'input window, operand 3, single buffered']
    #allocation9 [shape = 's32[1]{0}', space=sflag, size = 0x4, scoped, tag = 'scoped memory for tpu_custom_call.1']
    #allocation10 [shape = 'u8[196608]{0}', space=vmem, size = 0x30000, scoped, tag = 'input window, operand 4, single buffered']
    #allocation11 [shape = 'u8[196608]{0}', space=vmem, size = 0x30000, scoped, tag = 'input window, operand 5, single buffered']
    #allocation12 [shape = 's32[1]{0}', space=sflag, size = 0x4, scoped, tag = 'scoped memory for tpu_custom_call.1']
    #allocation13 [shape = 'u8[12288]{0}', space=vmem, size = 0x3000, scoped, tag = 'input window, operand 6, single buffered']
    #allocation14 [shape = 'u8[4096]{0}', space=vmem, size = 0x1000, scoped, tag = 'output window, operand 0, single buffered']
    %12 = vsyncpa [#allocation3], 0
    %13 = vsyncpa [#allocation6], 0
    %14 = vsyncpa [#allocation9], 0
    %15 = vsyncpa [#allocation12], 0
    %16 = vsyncpa [#allocation4], 0
    // Predicated region
    $region2: #{tpu_custom_call.1} parent=1 // pred_check
      _
    $region3: #{tpu_custom_call.1} parent=1 // pred_check_branch
      %18 = sbr.rel (0) target = $region5
    $region4: #{tpu_custom_call.1} parent=1 // pred_region
      %s20 = ssub.s32 128, 128
      %21 = vsyncadd [#allocation3], %s20
      %s23 = sshll.u32 [#allocation2], 4
      %s24 = int_to_ptr.vmem [resolvable:$true] %s23
      %26 = dma.hbm_to_vmem [thread:$0]  %s0, 128, %s24, [#allocation3]
    $region5: #{tpu_custom_call.1} parent=1 // pred_fallthru
      _
    // Predicated region
    $region6: #{tpu_custom_call.1} parent=1 // pred_check
      _
    $region7: #{tpu_custom_call.1} parent=1 // pred_check_branch
      %28 = sbr.rel (0) target = $region9
    $region8: #{tpu_custom_call.1} parent=1 // pred_region
      %s30 = ssub.s32 4096, 4096
      %31 = vsyncadd [#allocation6], %s30
      %s32 = sshll.u32 [#allocation5], 4
      %s33 = int_to_ptr.vmem [resolvable:$true] %s32
      %38 = dma.hbm_to_vmem [thread:$0]  %s1, 4096, %s33, [#allocation6], 256, 256, 16
    $region9: #{tpu_custom_call.1} parent=1 // pred_fallthru
      _
    // Predicated region
    $region10: #{tpu_custom_call.1} parent=1 // pred_check
      _
    $region11: #{tpu_custom_call.1} parent=1 // pred_check_branch
      %40 = sbr.rel (0) target = $region13
    $region12: #{tpu_custom_call.1} parent=1 // pred_region
      %s42 = ssub.s32 8192, 8192
      %43 = vsyncadd [#allocation6], %s42
      %s44 = sshll.u32 [#allocation7], 4
      %s45 = int_to_ptr.vmem [resolvable:$true] %s44
      %50 = dma.hbm_to_vmem [thread:$0]  %s2, 8192, %s45, [#allocation6], 256, 256, 16
    $region13: #{tpu_custom_call.1} parent=1 // pred_fallthru
      _
    // Predicated region
    $region14: #{tpu_custom_call.1} parent=1 // pred_check
      _
    $region15: #{tpu_custom_call.1} parent=1 // pred_check_branch
      %52 = sbr.rel (0) target = $region17
    $region16: #{tpu_custom_call.1} parent=1 // pred_region
      %s54 = ssub.s32 4096, 4096
      %55 = vsyncadd [#allocation9], %s54
      %s56 = sshll.u32 [#allocation8], 4
      %s57 = int_to_ptr.vmem [resolvable:$true] %s56
      %62 = dma.hbm_to_vmem [thread:$0]  %s3, 4096, %s57, [#allocation9], 128, 128, 8
    $region17: #{tpu_custom_call.1} parent=1 // pred_fallthru
      _
    // Predicated region
    $region18: #{tpu_custom_call.1} parent=1 // pred_check
      _
    $region19: #{tpu_custom_call.1} parent=1 // pred_check_branch
      %64 = sbr.rel (0) target = $region21
    $region20: #{tpu_custom_call.1} parent=1 // pred_region
      %s66 = ssub.s32 6144, 6144
      %67 = vsyncadd [#allocation9], %s66
      %s68 = sshll.u32 [#allocation10], 4
      %s69 = int_to_ptr.vmem [resolvable:$true] %s68
      %74 = dma.hbm_to_vmem [thread:$0]  %s4, 6144, %s69, [#allocation9], 384, 384, 24
    $region21: #{tpu_custom_call.1} parent=1 // pred_fallthru
      _
    // Predicated region
    $region22: #{tpu_custom_call.1} parent=1 // pred_check
      _
    $region23: #{tpu_custom_call.1} parent=1 // pred_check_branch
      %76 = sbr.rel (0) target = $region25
    $region24: #{tpu_custom_call.1} parent=1 // pred_region
      %s78 = ssub.s32 6144, 6144
      %79 = vsyncadd [#allocation12], %s78
      %s80 = sshll.u32 [#allocation11], 4
      %s81 = int_to_ptr.vmem [resolvable:$true] %s80
      %86 = dma.hbm_to_vmem [thread:$0]  %s5, 6144, %s81, [#allocation12], 128, 128, 8
    $region25: #{tpu_custom_call.1} parent=1 // pred_fallthru
      _
    // Predicated region
    $region26: #{tpu_custom_call.1} parent=1 // pred_check
      _
    $region27: #{tpu_custom_call.1} parent=1 // pred_check_branch
      %88 = sbr.rel (0) target = $region29
    $region28: #{tpu_custom_call.1} parent=1 // pred_region
      %s90 = ssub.s32 384, 384
      %91 = vsyncadd [#allocation12], %s90
      %s93 = sshll.u32 [#allocation13], 4
      %s94 = int_to_ptr.vmem [resolvable:$true] %s93
      %96 = dma.hbm_to_vmem [thread:$0]  %s6, 384, %s94, [#allocation12]
    $region29: #{tpu_custom_call.1} parent=1 // pred_fallthru
      _
    // Predicated region
    $region30: #{tpu_custom_call.1} parent=1 // pred_check
      _
    $region31: #{tpu_custom_call.1} parent=1 // pred_check_branch
      %98 = sbr.rel (0) target = $region33
    $region32: #{tpu_custom_call.1} parent=1 // pred_region
      %99 = dma.done [#allocation3], 128
    $region33: #{tpu_custom_call.1} parent=1 // pred_fallthru
      _
    // Predicated region
    $region34: #{tpu_custom_call.1} parent=1 // pred_check
      _
    $region35: #{tpu_custom_call.1} parent=1 // pred_check_branch
      %101 = sbr.rel (0) target = $region37
    $region36: #{tpu_custom_call.1} parent=1 // pred_region
      %102 = dma.done [#allocation6], 4096
    $region37: #{tpu_custom_call.1} parent=1 // pred_fallthru
      _
    // Predicated region
    $region38: #{tpu_custom_call.1} parent=1 // pred_check
      _
    $region39: #{tpu_custom_call.1} parent=1 // pred_check_branch
      %104 = sbr.rel (0) target = $region41
    $region40: #{tpu_custom_call.1} parent=1 // pred_region
      %105 = dma.done [#allocation6], 8192
    $region41: #{tpu_custom_call.1} parent=1 // pred_fallthru
      _
    // Predicated region
    $region42: #{tpu_custom_call.1} parent=1 // pred_check
      _
    $region43: #{tpu_custom_call.1} parent=1 // pred_check_branch
      %107 = sbr.rel (0) target = $region45
    $region44: #{tpu_custom_call.1} parent=1 // pred_region
      %108 = dma.done [#allocation9], 4096
    $region45: #{tpu_custom_call.1} parent=1 // pred_fallthru
      _
    // Predicated region
    $region46: #{tpu_custom_call.1} parent=1 // pred_check
      _
    $region47: #{tpu_custom_call.1} parent=1 // pred_check_branch
      %110 = sbr.rel (0) target = $region49
    $region48: #{tpu_custom_call.1} parent=1 // pred_region
      %111 = dma.done [#allocation9], 6144
    $region49: #{tpu_custom_call.1} parent=1 // pred_fallthru
      _
    // Predicated region
    $region50: #{tpu_custom_call.1} parent=1 // pred_check
      _
    $region51: #{tpu_custom_call.1} parent=1 // pred_check_branch
      %113 = sbr.rel (0) target = $region53
    $region52: #{tpu_custom_call.1} parent=1 // pred_region
      %114 = dma.done [#allocation12], 6144
    $region53: #{tpu_custom_call.1} parent=1 // pred_fallthru
      _
    // Predicated region
    $region54: #{tpu_custom_call.1} parent=1 // pred_check
      _
    $region55: #{tpu_custom_call.1} parent=1 // pred_check_branch
      %116 = sbr.rel (0) target = $region57
    $region56: #{tpu_custom_call.1} parent=1 // pred_region
      %117 = dma.done [#allocation12], 384
    $region57: #{tpu_custom_call.1} parent=1 // pred_fallthru
      _
    %v118 = vld [vmem:[#allocation2] sm:$0xff]
    %v119 = vld [vmem:[#allocation5] sm:$0xff]
    %v120 = vld [vmem:[#allocation5 + $0x8] sm:$0xff]
    %v121 = vld [vmem:[#allocation5 + $0x10] sm:$0xff]
    %v122 = vld [vmem:[#allocation5 + $0x18] sm:$0xff]
    %v123 = vld [vmem:[#allocation5 + $0x20] sm:$0xff]
    %v124 = vld [vmem:[#allocation5 + $0x28] sm:$0xff]
    %v125 = vld [vmem:[#allocation5 + $0x30] sm:$0xff]
    %v126 = vld [vmem:[#allocation5 + $0x38] sm:$0xff]
    %v127 = vld [vmem:[#allocation5 + $0x40] sm:$0xff]
    %v128 = vld [vmem:[#allocation5 + $0x48] sm:$0xff]
    %v129 = vld [vmem:[#allocation5 + $0x50] sm:$0xff]
    %v130 = vld [vmem:[#allocation5 + $0x58] sm:$0xff]
    %v131 = vld [vmem:[#allocation5 + $0x60] sm:$0xff]
    %v132 = vld [vmem:[#allocation5 + $0x68] sm:$0xff]
    %v133 = vld [vmem:[#allocation5 + $0x70] sm:$0xff]
    %v134 = vld [vmem:[#allocation5 + $0x78] sm:$0xff]
    %v135 = vld [vmem:[#allocation5 + $0x80] sm:$0xff]
    %v136 = vld [vmem:[#allocation5 + $0x88] sm:$0xff]
    %v137 = vld [vmem:[#allocation5 + $0x90] sm:$0xff]
    %v138 = vld [vmem:[#allocation5 + $0x98] sm:$0xff]
    %v139 = vld [vmem:[#allocation5 + $0xa0] sm:$0xff]
    %v140 = vld [vmem:[#allocation5 + $0xa8] sm:$0xff]
    %v141 = vld [vmem:[#allocation5 + $0xb0] sm:$0xff]
    %v142 = vld [vmem:[#allocation5 + $0xb8] sm:$0xff]
    %v143 = vld [vmem:[#allocation5 + $0xc0] sm:$0xff]
    %v144 = vld [vmem:[#allocation5 + $0xc8] sm:$0xff]
    %v145 = vld [vmem:[#allocation5 + $0xd0] sm:$0xff]
    %v146 = vld [vmem:[#allocation5 + $0xd8] sm:$0xff]
    %v147 = vld [vmem:[#allocation5 + $0xe0] sm:$0xff]
    %v148 = vld [vmem:[#allocation5 + $0xe8] sm:$0xff]
    %v149 = vld [vmem:[#allocation5 + $0xf0] sm:$0xff]
    %v150 = vld [vmem:[#allocation5 + $0xf8] sm:$0xff]
    %v151 = vld [vmem:[#allocation13] ss:$8 sm:$0x3]
    %v153 = vlaneseq
    %v154 = vshrl.u32 %v153, 7
    %v155 = vsub.s32 0, %v154
    %v156 = vrot.slane %v151, %v155
    %v157 = vlaneseq
    %v158 = vshrl.u32 %v157, 7
    %v159 = vsub.s32 1, %v158
    %v160 = vrot.slane %v151, %v159
    %163 = vmatprep.subr.mxu0 %v150
    %164 = vmatpush1.msra.mxu0 %v149
    %165 = vmatprep.subr.mxu0 %v148
    %166 = vmatpush1.msra.mxu0 %v147
    %167 = vmatprep.subr.mxu0 %v146
    %168 = vmatpush1.msra.mxu0 %v145
    %169 = vmatprep.subr.mxu0 %v144
    %170 = vmatpush1.msra.mxu0 %v143
    %171 = vmatprep.subr.mxu0 %v142
    %172 = vmatpush1.msra.mxu0 %v141
    %173 = vmatprep.subr.mxu0 %v140
    %174 = vmatpush1.msra.mxu0 %v139
    %175 = vmatprep.subr.mxu0 %v138
    %176 = vmatpush1.msra.mxu0 %v137
    %177 = vmatprep.subr.mxu0 %v136
    %178 = vmatpush1.msra.mxu0 %v135
    %179 = vmatprep.subr.mxu0 %v134
    %180 = vmatpush1.msra.mxu0 %v133
    %181 = vmatprep.subr.mxu0 %v132
    %182 = vmatpush1.msra.mxu0 %v131
    %183 = vmatprep.subr.mxu0 %v130
    %184 = vmatpush1.msra.mxu0 %v129
    %185 = vmatprep.subr.mxu0 %v128
    %186 = vmatpush1.msra.mxu0 %v127
    %187 = vmatprep.subr.mxu0 %v126
    %188 = vmatpush1.msra.mxu0 %v125
    %189 = vmatprep.subr.mxu0 %v124
    %190 = vmatpush1.msra.mxu0 %v123
    %191 = vmatprep.subr.mxu0 %v122
    %192 = vmatpush1.msra.mxu0 %v121
    %193 = vmatprep.subr.mxu0 %v120
    %194 = vmatpush1.msra.mxu0 %v119
    %195 = vmatprep.subr.mxu0 0.0
    %196 = vmatpush2.msra.mxu0 0.0
    %197 = vmatprep.subr.mxu0 0.0
    %198 = vmatpush2.msra.mxu0 0.0
    %199 = vmatprep.subr.mxu0 0.0
    %200 = vmatpush2.msra.mxu0 0.0
    %201 = vmatprep.subr.mxu0 0.0
    %202 = vmatpush2.msra.mxu0 0.0
    %203 = vmatprep.subr.mxu0 0.0
    %204 = vmatpush2.msra.mxu0 0.0
    %205 = vmatprep.subr.mxu0 0.0
    %206 = vmatpush2.msra.mxu0 0.0
    %207 = vmatprep.subr.mxu0 0.0
    %208 = vmatpush2.msra.mxu0 0.0
    %209 = vmatprep.subr.mxu0 0.0
    %210 = vmatpush2.msra.mxu0 0.0
    %211 = vmatprep.subr.mxu0 0.0
    %212 = vmatpush2.msra.mxu0 0.0
    %213 = vmatprep.subr.mxu0 0.0
    %214 = vmatpush2.msra.mxu0 0.0
    %215 = vmatprep.subr.mxu0 0.0
    %216 = vmatpush2.msra.mxu0 0.0
    %217 = vmatprep.subr.mxu0 0.0
    %218 = vmatpush2.msra.mxu0 0.0
    %219 = vmatprep.subr.mxu0 0.0
    %220 = vmatpush2.msra.mxu0 0.0
    %221 = vmatprep.subr.mxu0 0.0
    %222 = vmatpush2.msra.mxu0 0.0
    %223 = vmatprep.subr.mxu0 0.0
    %224 = vmatpush2.msra.mxu0 0.0
    %225 = vmatprep.subr.mxu0 0.0
    %226 = vmatpush2.msra.mxu0 0.0
    %227 = vmatprep.mubr.f32.mxu0 0.0
    %228 = vmatmul.mubr.f32.gmra.mxu0 %v118
    %v229 = vpop.f32.mrf.mxu0
    %v230 = vadd.f32 %v156, %v229
    %v231 = vpop.f32.mrf.mxu0
    %v232 = vadd.f32 %v160, %v231
    %233 = vdwg.mxu0
    %v234 = vadd.f32 %v230, %v232
    %235 = vadd.xlane.f32.xlu0 %v234
    %v236 = vpop.xlane.xlu0 %235
    %v237 = vrcp.pop 256.0
    %v238 = vmul.f32 %v236, %v237
    %v239 = vsub.f32 %v230, %v238
    %v240 = vsub.f32 %v232, %v238
    %v241 = vmul.f32 %v239, %v239
    %v242 = vmul.f32 %v240, %v240
    %v243 = vadd.f32 %v241, %v242
    %244 = vadd.xlane.f32.xlu0 %v243
    %v245 = vpop.xlane.xlu0 %244
    %v246 = vmul.f32 %v245, %v237
    %v247 = vadd.f32 %v246, 1e-05
    %v248 = vrsqrt.pop %v247
    %v249 = vmul.f32 %v239, %v248
    %v250 = vmul.f32 %v240, %v248
    %s251 = scalar_lea.vmem [#allocation13], 1
    %v252 = vld [vmem:[%s251] ss:$8 sm:$0x3]
    %v254 = vlaneseq
    %v255 = vshrl.u32 %v254, 7
    %v256 = vsub.s32 0, %v255
    %v257 = vrot.slane %v252, %v256
    %v258 = vlaneseq
    %v259 = vshrl.u32 %v258, 7
    %v260 = vsub.s32 1, %v259
    %v261 = vrot.slane %v252, %v260
    %v264 = vmul.f32 %v249, %v257
    %v265 = vmul.f32 %v250, %v261
    %s266 = scalar_lea.vmem [#allocation13], 2
    %v267 = vld [vmem:[%s266] ss:$8 sm:$0x3]
    %v269 = vlaneseq
    %v270 = vshrl.u32 %v269, 7
    %v271 = vsub.s32 0, %v270
    %v272 = vrot.slane %v267, %v271
    %v273 = vlaneseq
    %v274 = vshrl.u32 %v273, 7
    %v275 = vsub.s32 1, %v274
    %v276 = vrot.slane %v267, %v275
    %v279 = vadd.f32 %v264, %v272
    %v280 = vadd.f32 %v265, %v276
    %v281 = vmax.f32 %v279, 0.0
    %v282 = vmax.f32 %v280, 0.0
    %v283 = vld [vmem:[#allocation7] sm:$0xff]
    %v284 = vld [vmem:[#allocation7 + $0x8] sm:$0xff]
    %v285 = vld [vmem:[#allocation7 + $0x10] sm:$0xff]
    %v286 = vld [vmem:[#allocation7 + $0x18] sm:$0xff]
    %v287 = vld [vmem:[#allocation7 + $0x20] sm:$0xff]
    %v288 = vld [vmem:[#allocation7 + $0x28] sm:$0xff]
    %v289 = vld [vmem:[#allocation7 + $0x30] sm:$0xff]
    %v290 = vld [vmem:[#allocation7 + $0x38] sm:$0xff]
    %v291 = vld [vmem:[#allocation7 + $0x40] sm:$0xff]
    %v292 = vld [vmem:[#allocation7 + $0x48] sm:$0xff]
    %v293 = vld [vmem:[#allocation7 + $0x50] sm:$0xff]
    %v294 = vld [vmem:[#allocation7 + $0x58] sm:$0xff]
    %v295 = vld [vmem:[#allocation7 + $0x60] sm:$0xff]
    %v296 = vld [vmem:[#allocation7 + $0x68] sm:$0xff]
    %v297 = vld [vmem:[#allocation7 + $0x70] sm:$0xff]
    %v298 = vld [vmem:[#allocation7 + $0x78] sm:$0xff]
    %v299 = vld [vmem:[#allocation7 + $0x80] sm:$0xff]
    %v300 = vld [vmem:[#allocation7 + $0x88] sm:$0xff]
    %v301 = vld [vmem:[#allocation7 + $0x90] sm:$0xff]
    %v302 = vld [vmem:[#allocation7 + $0x98] sm:$0xff]
    %v303 = vld [vmem:[#allocation7 + $0xa0] sm:$0xff]
    %v304 = vld [vmem:[#allocation7 + $0xa8] sm:$0xff]
    %v305 = vld [vmem:[#allocation7 + $0xb0] sm:$0xff]
    %v306 = vld [vmem:[#allocation7 + $0xb8] sm:$0xff]
    %v307 = vld [vmem:[#allocation7 + $0xc0] sm:$0xff]
    %v308 = vld [vmem:[#allocation7 + $0xc8] sm:$0xff]
    %v309 = vld [vmem:[#allocation7 + $0xd0] sm:$0xff]
    %v310 = vld [vmem:[#allocation7 + $0xd8] sm:$0xff]
    %v311 = vld [vmem:[#allocation7 + $0xe0] sm:$0xff]
    %v312 = vld [vmem:[#allocation7 + $0xe8] sm:$0xff]
    %v313 = vld [vmem:[#allocation7 + $0xf0] sm:$0xff]
    %v314 = vld [vmem:[#allocation7 + $0xf8] sm:$0xff]
    %v315 = vld [vmem:[#allocation7 + $0x100] sm:$0xff]
    %v316 = vld [vmem:[#allocation7 + $0x108] sm:$0xff]
    %v317 = vld [vmem:[#allocation7 + $0x110] sm:$0xff]
    %v318 = vld [vmem:[#allocation7 + $0x118] sm:$0xff]
    %v319 = vld [vmem:[#allocation7 + $0x120] sm:$0xff]
    %v320 = vld [vmem:[#allocation7 + $0x128] sm:$0xff]
    %v321 = vld [vmem:[#allocation7 + $0x130] sm:$0xff]
    %v322 = vld [vmem:[#allocation7 + $0x138] sm:$0xff]
    %v323 = vld [vmem:[#allocation7 + $0x140] sm:$0xff]
    %v324 = vld [vmem:[#allocation7 + $0x148] sm:$0xff]
    %v325 = vld [vmem:[#allocation7 + $0x150] sm:$0xff]
    %v326 = vld [vmem:[#allocation7 + $0x158] sm:$0xff]
    %v327 = vld [vmem:[#allocation7 + $0x160] sm:$0xff]
    %v328 = vld [vmem:[#allocation7 + $0x168] sm:$0xff]
    %v329 = vld [vmem:[#allocation7 + $0x170] sm:$0xff]
    %v330 = vld [vmem:[#allocation7 + $0x178] sm:$0xff]
    %v331 = vld [vmem:[#allocation7 + $0x180] sm:$0xff]
    %v332 = vld [vmem:[#allocation7 + $0x188] sm:$0xff]
    %v333 = vld [vmem:[#allocation7 + $0x190] sm:$0xff]
    %v334 = vld [vmem:[#allocation7 + $0x198] sm:$0xff]
    %v335 = vld [vmem:[#allocation7 + $0x1a0] sm:$0xff]
    %v336 = vld [vmem:[#allocation7 + $0x1a8] sm:$0xff]
    %v337 = vld [vmem:[#allocation7 + $0x1b0] sm:$0xff]
    %v338 = vld [vmem:[#allocation7 + $0x1b8] sm:$0xff]
    %v339 = vld [vmem:[#allocation7 + $0x1c0] sm:$0xff]
    %v340 = vld [vmem:[#allocation7 + $0x1c8] sm:$0xff]
    %v341 = vld [vmem:[#allocation7 + $0x1d0] sm:$0xff]
    %v342 = vld [vmem:[#allocation7 + $0x1d8] sm:$0xff]
    %v343 = vld [vmem:[#allocation7 + $0x1e0] sm:$0xff]
    %v344 = vld [vmem:[#allocation7 + $0x1e8] sm:$0xff]
    %v345 = vld [vmem:[#allocation7 + $0x1f0] sm:$0xff]
    %v346 = vld [vmem:[#allocation7 + $0x1f8] sm:$0xff]
    %s347 = scalar_lea.vmem [#allocation13], 3
    %v348 = vld [vmem:[%s347] ss:$8 sm:$0x3]
    %v350 = vlaneseq
    %v351 = vshrl.u32 %v350, 7
    %v352 = vsub.s32 0, %v351
    %v353 = vrot.slane %v348, %v352
    %v354 = vlaneseq
    %v355 = vshrl.u32 %v354, 7
    %v356 = vsub.s32 1, %v355
    %v357 = vrot.slane %v348, %v356
    %360 = vmatprep.subr.mxu0 %v314
    %361 = vmatpush1.msra.mxu0 %v313
    %362 = vmatprep.subr.mxu0 %v312
    %363 = vmatpush1.msra.mxu0 %v311
    %364 = vmatprep.subr.mxu0 %v310
    %365 = vmatpush1.msra.mxu0 %v309
    %366 = vmatprep.subr.mxu0 %v308
    %367 = vmatpush1.msra.mxu0 %v307
    %368 = vmatprep.subr.mxu0 %v306
    %369 = vmatpush1.msra.mxu0 %v305
    %370 = vmatprep.subr.mxu0 %v304
    %371 = vmatpush1.msra.mxu0 %v303
    %372 = vmatprep.subr.mxu0 %v302
    %373 = vmatpush1.msra.mxu0 %v301
    %374 = vmatprep.subr.mxu0 %v300
    %375 = vmatpush1.msra.mxu0 %v299
    %376 = vmatprep.subr.mxu0 %v298
    %377 = vmatpush1.msra.mxu0 %v297
    %378 = vmatprep.subr.mxu0 %v296
    %379 = vmatpush1.msra.mxu0 %v295
    %380 = vmatprep.subr.mxu0 %v294
    %381 = vmatpush1.msra.mxu0 %v293
    %382 = vmatprep.subr.mxu0 %v292
    %383 = vmatpush1.msra.mxu0 %v291
    %384 = vmatprep.subr.mxu0 %v290
    %385 = vmatpush1.msra.mxu0 %v289
    %386 = vmatprep.subr.mxu0 %v288
    %387 = vmatpush1.msra.mxu0 %v287
    %388 = vmatprep.subr.mxu0 %v286
    %389 = vmatpush1.msra.mxu0 %v285
    %390 = vmatprep.subr.mxu0 %v284
    %391 = vmatpush1.msra.mxu0 %v283
    %392 = vmatprep.subr.mxu0 %v346
    %393 = vmatpush2.msra.mxu0 %v345
    %394 = vmatprep.subr.mxu0 %v344
    %395 = vmatpush2.msra.mxu0 %v343
    %396 = vmatprep.subr.mxu0 %v342
    %397 = vmatpush2.msra.mxu0 %v341
    %398 = vmatprep.subr.mxu0 %v340
    %399 = vmatpush2.msra.mxu0 %v339
    %400 = vmatprep.subr.mxu0 %v338
    %401 = vmatpush2.msra.mxu0 %v337
    %402 = vmatprep.subr.mxu0 %v336
    %403 = vmatpush2.msra.mxu0 %v335
    %404 = vmatprep.subr.mxu0 %v334
    %405 = vmatpush2.msra.mxu0 %v333
    %406 = vmatprep.subr.mxu0 %v332
    %407 = vmatpush2.msra.mxu0 %v331
    %408 = vmatprep.subr.mxu0 %v330
    %409 = vmatpush2.msra.mxu0 %v329
    %410 = vmatprep.subr.mxu0 %v328
    %411 = vmatpush2.msra.mxu0 %v327
    %412 = vmatprep.subr.mxu0 %v326
    %413 = vmatpush2.msra.mxu0 %v325
    %414 = vmatprep.subr.mxu0 %v324
    %415 = vmatpush2.msra.mxu0 %v323
    %416 = vmatprep.subr.mxu0 %v322
    %417 = vmatpush2.msra.mxu0 %v321
    %418 = vmatprep.subr.mxu0 %v320
    %419 = vmatpush2.msra.mxu0 %v319
    %420 = vmatprep.subr.mxu0 %v318
    %421 = vmatpush2.msra.mxu0 %v317
    %422 = vmatprep.subr.mxu0 %v316
    %423 = vmatpush2.msra.mxu0 %v315
    %424 = vmatprep.mubr.f32.mxu0 %v282
    %425 = vmatmul.mubr.f32.gmra.mxu0 %v281
    %v426 = vpop.f32.mrf.mxu0
    %v427 = vadd.f32 %v353, %v426
    %v428 = vpop.f32.mrf.mxu0
    %v429 = vadd.f32 %v357, %v428
    %430 = vdwg.mxu0
    %v431 = vmax.f32 %v427, 0.0
    %v432 = vmax.f32 %v429, 0.0
    %v433 = vld [vmem:[#allocation8] sm:$0xff]
    %v434 = vld [vmem:[#allocation8 + $0x8] sm:$0xff]
    %v435 = vld [vmem:[#allocation8 + $0x10] sm:$0xff]
    %v436 = vld [vmem:[#allocation8 + $0x18] sm:$0xff]
    %v437 = vld [vmem:[#allocation8 + $0x20] sm:$0xff]
    %v438 = vld [vmem:[#allocation8 + $0x28] sm:$0xff]
    %v439 = vld [vmem:[#allocation8 + $0x30] sm:$0xff]
    %v440 = vld [vmem:[#allocation8 + $0x38] sm:$0xff]
    %v441 = vld [vmem:[#allocation8 + $0x40] sm:$0xff]
    %v442 = vld [vmem:[#allocation8 + $0x48] sm:$0xff]
    %v443 = vld [vmem:[#allocation8 + $0x50] sm:$0xff]
    %v444 = vld [vmem:[#allocation8 + $0x58] sm:$0xff]
    %v445 = vld [vmem:[#allocation8 + $0x60] sm:$0xff]
    %v446 = vld [vmem:[#allocation8 + $0x68] sm:$0xff]
    %v447 = vld [vmem:[#allocation8 + $0x70] sm:$0xff]
    %v448 = vld [vmem:[#allocation8 + $0x78] sm:$0xff]
    %v449 = vld [vmem:[#allocation8 + $0x80] sm:$0xff]
    %v450 = vld [vmem:[#allocation8 + $0x88] sm:$0xff]
    %v451 = vld [vmem:[#allocation8 + $0x90] sm:$0xff]
    %v452 = vld [vmem:[#allocation8 + $0x98] sm:$0xff]
    %v453 = vld [vmem:[#allocation8 + $0xa0] sm:$0xff]
    %v454 = vld [vmem:[#allocation8 + $0xa8] sm:$0xff]
    %v455 = vld [vmem:[#allocation8 + $0xb0] sm:$0xff]
    %v456 = vld [vmem:[#allocation8 + $0xb8] sm:$0xff]
    %v457 = vld [vmem:[#allocation8 + $0xc0] sm:$0xff]
    %v458 = vld [vmem:[#allocation8 + $0xc8] sm:$0xff]
    %v459 = vld [vmem:[#allocation8 + $0xd0] sm:$0xff]
    %v460 = vld [vmem:[#allocation8 + $0xd8] sm:$0xff]
    %v461 = vld [vmem:[#allocation8 + $0xe0] sm:$0xff]
    %v462 = vld [vmem:[#allocation8 + $0xe8] sm:$0xff]
    %v463 = vld [vmem:[#allocation8 + $0xf0] sm:$0xff]
    %v464 = vld [vmem:[#allocation8 + $0xf8] sm:$0xff]
    %v465 = vld [vmem:[#allocation13 + $0x4] ss:$0 sm:$0xff]
    %466 = vmatprep.subr.mxu0 0.0
    %467 = vmatpush1.msra.mxu0 %v448
    %468 = vmatprep.subr.mxu0 0.0
    %469 = vmatpush1.msra.mxu0 %v447
    %470 = vmatprep.subr.mxu0 0.0
    %471 = vmatpush1.msra.mxu0 %v446
    %472 = vmatprep.subr.mxu0 0.0
    %473 = vmatpush1.msra.mxu0 %v445
    %474 = vmatprep.subr.mxu0 0.0
    %475 = vmatpush1.msra.mxu0 %v444
    %476 = vmatprep.subr.mxu0 0.0
    %477 = vmatpush1.msra.mxu0 %v443
    %478 = vmatprep.subr.mxu0 0.0
    %479 = vmatpush1.msra.mxu0 %v442
    %480 = vmatprep.subr.mxu0 0.0
    %481 = vmatpush1.msra.mxu0 %v441
    %482 = vmatprep.subr.mxu0 0.0
    %483 = vmatpush1.msra.mxu0 %v440
    %484 = vmatprep.subr.mxu0 0.0
    %485 = vmatpush1.msra.mxu0 %v439
    %486 = vmatprep.subr.mxu0 0.0
    %487 = vmatpush1.msra.mxu0 %v438
    %488 = vmatprep.subr.mxu0 0.0
    %489 = vmatpush1.msra.mxu0 %v437
    %490 = vmatprep.subr.mxu0 0.0
    %491 = vmatpush1.msra.mxu0 %v436
    %492 = vmatprep.subr.mxu0 0.0
    %493 = vmatpush1.msra.mxu0 %v435
    %494 = vmatprep.subr.mxu0 0.0
    %495 = vmatpush1.msra.mxu0 %v434
    %496 = vmatprep.subr.mxu0 0.0
    %497 = vmatpush1.msra.mxu0 %v433
    %498 = vmatprep.subr.mxu0 0.0
    %499 = vmatpush2.msra.mxu0 %v464
    %500 = vmatprep.subr.mxu0 0.0
    %501 = vmatpush2.msra.mxu0 %v463
    %502 = vmatprep.subr.mxu0 0.0
    %503 = vmatpush2.msra.mxu0 %v462
    %504 = vmatprep.subr.mxu0 0.0
    %505 = vmatpush2.msra.mxu0 %v461
    %506 = vmatprep.subr.mxu0 0.0
    %507 = vmatpush2.msra.mxu0 %v460
    %508 = vmatprep.subr.mxu0 0.0
    %509 = vmatpush2.msra.mxu0 %v459
    %510 = vmatprep.subr.mxu0 0.0
    %511 = vmatpush2.msra.mxu0 %v458
    %512 = vmatprep.subr.mxu0 0.0
    %513 = vmatpush2.msra.mxu0 %v457
    %514 = vmatprep.subr.mxu0 0.0
    %515 = vmatpush2.msra.mxu0 %v456
    %516 = vmatprep.subr.mxu0 0.0
    %517 = vmatpush2.msra.mxu0 %v455
    %518 = vmatprep.subr.mxu0 0.0
    %519 = vmatpush2.msra.mxu0 %v454
    %520 = vmatprep.subr.mxu0 0.0
    %521 = vmatpush2.msra.mxu0 %v453
    %522 = vmatprep.subr.mxu0 0.0
    %523 = vmatpush2.msra.mxu0 %v452
    %524 = vmatprep.subr.mxu0 0.0
    %525 = vmatpush2.msra.mxu0 %v451
    %526 = vmatprep.subr.mxu0 0.0
    %527 = vmatpush2.msra.mxu0 %v450
    %528 = vmatprep.subr.mxu0 0.0
    %529 = vmatpush2.msra.mxu0 %v449
    %530 = vmatprep.mubr.f32.mxu0 %v432
    %531 = vmatmul.mubr.f32.gmra.mxu0 %v431
    %v532 = vpop.f32.mrf.mxu0
    %v533 = vadd.f32 %v465, %v532
    %v534 = vpop.f32.mrf.mxu0
    %535 = vdwg.mxu0
    %v536 = vmax.f32 %v533, 0.0
    %v537 = vld [vmem:[#allocation10] sm:$0xff]
    %v538 = vld [vmem:[#allocation10 + $0x8] sm:$0xff]
    %v539 = vld [vmem:[#allocation10 + $0x10] sm:$0xff]
    %v540 = vld [vmem:[#allocation10 + $0x18] sm:$0xff]
    %v541 = vld [vmem:[#allocation10 + $0x20] sm:$0xff]
    %v542 = vld [vmem:[#allocation10 + $0x28] sm:$0xff]
    %v543 = vld [vmem:[#allocation10 + $0x30] sm:$0xff]
    %v544 = vld [vmem:[#allocation10 + $0x38] sm:$0xff]
    %v545 = vld [vmem:[#allocation10 + $0x40] sm:$0xff]
    %v546 = vld [vmem:[#allocation10 + $0x48] sm:$0xff]
    %v547 = vld [vmem:[#allocation10 + $0x50] sm:$0xff]
    %v548 = vld [vmem:[#allocation10 + $0x58] sm:$0xff]
    %v549 = vld [vmem:[#allocation10 + $0x60] sm:$0xff]
    %v550 = vld [vmem:[#allocation10 + $0x68] sm:$0xff]
    %v551 = vld [vmem:[#allocation10 + $0x70] sm:$0xff]
    %v552 = vld [vmem:[#allocation10 + $0x78] sm:$0xff]
    %v553 = vld [vmem:[#allocation10 + $0x80] sm:$0xff]
    %v554 = vld [vmem:[#allocation10 + $0x88] sm:$0xff]
    %v555 = vld [vmem:[#allocation10 + $0x90] sm:$0xff]
    %v556 = vld [vmem:[#allocation10 + $0x98] sm:$0xff]
    %v557 = vld [vmem:[#allocation10 + $0xa0] sm:$0xff]
    %v558 = vld [vmem:[#allocation10 + $0xa8] sm:$0xff]
    %v559 = vld [vmem:[#allocation10 + $0xb0] sm:$0xff]
    %v560 = vld [vmem:[#allocation10 + $0xb8] sm:$0xff]
    %v561 = vld [vmem:[#allocation10 + $0xc0] sm:$0xff]
    %v562 = vld [vmem:[#allocation10 + $0xc8] sm:$0xff]
    %v563 = vld [vmem:[#allocation10 + $0xd0] sm:$0xff]
    %v564 = vld [vmem:[#allocation10 + $0xd8] sm:$0xff]
    %v565 = vld [vmem:[#allocation10 + $0xe0] sm:$0xff]
    %v566 = vld [vmem:[#allocation10 + $0xe8] sm:$0xff]
    %v567 = vld [vmem:[#allocation10 + $0xf0] sm:$0xff]
    %v568 = vld [vmem:[#allocation10 + $0xf8] sm:$0xff]
    %v569 = vld [vmem:[#allocation10 + $0x100] sm:$0xff]
    %v570 = vld [vmem:[#allocation10 + $0x108] sm:$0xff]
    %v571 = vld [vmem:[#allocation10 + $0x110] sm:$0xff]
    %v572 = vld [vmem:[#allocation10 + $0x118] sm:$0xff]
    %v573 = vld [vmem:[#allocation10 + $0x120] sm:$0xff]
    %v574 = vld [vmem:[#allocation10 + $0x128] sm:$0xff]
    %v575 = vld [vmem:[#allocation10 + $0x130] sm:$0xff]
    %v576 = vld [vmem:[#allocation10 + $0x138] sm:$0xff]
    %v577 = vld [vmem:[#allocation10 + $0x140] sm:$0xff]
    %v578 = vld [vmem:[#allocation10 + $0x148] sm:$0xff]
    %v579 = vld [vmem:[#allocation10 + $0x150] sm:$0xff]
    %v580 = vld [vmem:[#allocation10 + $0x158] sm:$0xff]
    %v581 = vld [vmem:[#allocation10 + $0x160] sm:$0xff]
    %v582 = vld [vmem:[#allocation10 + $0x168] sm:$0xff]
    %v583 = vld [vmem:[#allocation10 + $0x170] sm:$0xff]
    %v584 = vld [vmem:[#allocation10 + $0x178] sm:$0xff]
    %s585 = scalar_lea.vmem [#allocation13], 5
    %v586 = vld [vmem:[%s585] ss:$8 sm:$0x7]
    %v588 = vlaneseq
    %v589 = vshrl.u32 %v588, 7
    %v590 = vsub.s32 0, %v589
    %v591 = vrot.slane %v586, %v590
    %v592 = vlaneseq
    %v593 = vshrl.u32 %v592, 7
    %v594 = vsub.s32 1, %v593
    %v595 = vrot.slane %v586, %v594
    %v596 = vlaneseq
    %v597 = vshrl.u32 %v596, 7
    %v598 = vsub.s32 2, %v597
    %v599 = vrot.slane %v586, %v598
    %603 = vmatprep.subr.mxu0 %v583
    %604 = vmatpush1.msra.mxu0 %v582
    %605 = vmatprep.subr.mxu0 %v580
    %606 = vmatpush1.msra.mxu0 %v579
    %607 = vmatprep.subr.mxu0 %v577
    %608 = vmatpush1.msra.mxu0 %v576
    %609 = vmatprep.subr.mxu0 %v574
    %610 = vmatpush1.msra.mxu0 %v573
    %611 = vmatprep.subr.mxu0 %v571
    %612 = vmatpush1.msra.mxu0 %v570
    %613 = vmatprep.subr.mxu0 %v568
    %614 = vmatpush1.msra.mxu0 %v567
    %615 = vmatprep.subr.mxu0 %v565
    %616 = vmatpush1.msra.mxu0 %v564
    %617 = vmatprep.subr.mxu0 %v562
    %618 = vmatpush1.msra.mxu0 %v561
    %619 = vmatprep.subr.mxu0 %v559
    %620 = vmatpush1.msra.mxu0 %v558
    %621 = vmatprep.subr.mxu0 %v556
    %622 = vmatpush1.msra.mxu0 %v555
    %623 = vmatprep.subr.mxu0 %v553
    %624 = vmatpush1.msra.mxu0 %v552
    %625 = vmatprep.subr.mxu0 %v550
    %626 = vmatpush1.msra.mxu0 %v549
    %627 = vmatprep.subr.mxu0 %v547
    %628 = vmatpush1.msra.mxu0 %v546
    %629 = vmatprep.subr.mxu0 %v544
    %630 = vmatpush1.msra.mxu0 %v543
    %631 = vmatprep.subr.mxu0 %v541
    %632 = vmatpush1.msra.mxu0 %v540
    %633 = vmatprep.subr.mxu0 %v538
    %634 = vmatpush1.msra.mxu0 %v537
    %635 = vmatprep.subr.mxu0 0.0
    %636 = vmatpush2.msra.mxu0 0.0
    %637 = vmatprep.subr.mxu0 0.0
    %638 = vmatpush2.msra.mxu0 0.0
    %639 = vmatprep.subr.mxu0 0.0
    %640 = vmatpush2.msra.mxu0 0.0
    %641 = vmatprep.subr.mxu0 0.0
    %642 = vmatpush2.msra.mxu0 0.0
    %643 = vmatprep.subr.mxu0 0.0
    %644 = vmatpush2.msra.mxu0 0.0
    %645 = vmatprep.subr.mxu0 0.0
    %646 = vmatpush2.msra.mxu0 0.0
    %647 = vmatprep.subr.mxu0 0.0
    %648 = vmatpush2.msra.mxu0 0.0
    %649 = vmatprep.subr.mxu0 0.0
    %650 = vmatpush2.msra.mxu0 0.0
    %651 = vmatprep.subr.mxu0 0.0
    %652 = vmatpush2.msra.mxu0 0.0
    %653 = vmatprep.subr.mxu0 0.0
    %654 = vmatpush2.msra.mxu0 0.0
    %655 = vmatprep.subr.mxu0 0.0
    %656 = vmatpush2.msra.mxu0 0.0
    %657 = vmatprep.subr.mxu0 0.0
    %658 = vmatpush2.msra.mxu0 0.0
    %659 = vmatprep.subr.mxu0 0.0
    %660 = vmatpush2.msra.mxu0 0.0
    %661 = vmatprep.subr.mxu0 0.0
    %662 = vmatpush2.msra.mxu0 0.0
    %663 = vmatprep.subr.mxu0 0.0
    %664 = vmatpush2.msra.mxu0 0.0
    %665 = vmatprep.subr.mxu0 0.0
    %666 = vmatpush2.msra.mxu0 0.0
    %667 = vmatprep.mubr.f32.mxu0 0.0
    %668 = vmatmul.mubr.f32.gmra.mxu0 %v536
    %v669 = vpop.f32.mrf.mxu0
    %v670 = vadd.f32 %v591, %v669
    %v671 = vpop.f32.mrf.mxu0
    %v672 = vadd.f32 %v595, %v671
    %673 = vdwg.mxu0
    %674 = vmatprep.subr.mxu0 0.0
    %675 = vmatpush1.msra.mxu0 %v584
    %676 = vmatprep.subr.mxu0 0.0
    %677 = vmatpush1.msra.mxu0 %v581
    %678 = vmatprep.subr.mxu0 0.0
    %679 = vmatpush1.msra.mxu0 %v578
    %680 = vmatprep.subr.mxu0 0.0
    %681 = vmatpush1.msra.mxu0 %v575
    %682 = vmatprep.subr.mxu0 0.0
    %683 = vmatpush1.msra.mxu0 %v572
    %684 = vmatprep.subr.mxu0 0.0
    %685 = vmatpush1.msra.mxu0 %v569
    %686 = vmatprep.subr.mxu0 0.0
    %687 = vmatpush1.msra.mxu0 %v566
    %688 = vmatprep.subr.mxu0 0.0
    %689 = vmatpush1.msra.mxu0 %v563
    %690 = vmatprep.subr.mxu0 0.0
    %691 = vmatpush1.msra.mxu0 %v560
    %692 = vmatprep.subr.mxu0 0.0
    %693 = vmatpush1.msra.mxu0 %v557
    %694 = vmatprep.subr.mxu0 0.0
    %695 = vmatpush1.msra.mxu0 %v554
    %696 = vmatprep.subr.mxu0 0.0
    %697 = vmatpush1.msra.mxu0 %v551
    %698 = vmatprep.subr.mxu0 0.0
    %699 = vmatpush1.msra.mxu0 %v548
    %700 = vmatprep.subr.mxu0 0.0
    %701 = vmatpush1.msra.mxu0 %v545
    %702 = vmatprep.subr.mxu0 0.0
    %703 = vmatpush1.msra.mxu0 %v542
    %704 = vmatprep.subr.mxu0 0.0
    %705 = vmatpush1.msra.mxu0 %v539
    %706 = vmatprep.subr.mxu0 0.0
    %707 = vmatpush2.msra.mxu0 0.0
    %708 = vmatprep.subr.mxu0 0.0
    %709 = vmatpush2.msra.mxu0 0.0
    %710 = vmatprep.subr.mxu0 0.0
    %711 = vmatpush2.msra.mxu0 0.0
    %712 = vmatprep.subr.mxu0 0.0
    %713 = vmatpush2.msra.mxu0 0.0
    %714 = vmatprep.subr.mxu0 0.0
    %715 = vmatpush2.msra.mxu0 0.0
    %716 = vmatprep.subr.mxu0 0.0
    %717 = vmatpush2.msra.mxu0 0.0
    %718 = vmatprep.subr.mxu0 0.0
    %719 = vmatpush2.msra.mxu0 0.0
    %720 = vmatprep.subr.mxu0 0.0
    %721 = vmatpush2.msra.mxu0 0.0
    %722 = vmatprep.subr.mxu0 0.0
    %723 = vmatpush2.msra.mxu0 0.0
    %724 = vmatprep.subr.mxu0 0.0
    %725 = vmatpush2.msra.mxu0 0.0
    %726 = vmatprep.subr.mxu0 0.0
    %727 = vmatpush2.msra.mxu0 0.0
    %728 = vmatprep.subr.mxu0 0.0
    %729 = vmatpush2.msra.mxu0 0.0
    %730 = vmatprep.subr.mxu0 0.0
    %731 = vmatpush2.msra.mxu0 0.0
    %732 = vmatprep.subr.mxu0 0.0
    %733 = vmatpush2.msra.mxu0 0.0
    %734 = vmatprep.subr.mxu0 0.0
    %735 = vmatpush2.msra.mxu0 0.0
    %736 = vmatprep.subr.mxu0 0.0
    %737 = vmatpush2.msra.mxu0 0.0
    %738 = vmatprep.mubr.f32.mxu0 0.0
    %739 = vmatmul.mubr.f32.gmra.mxu0 %v536
    %v740 = vpop.f32.mrf.mxu0
    %v741 = vadd.f32 %v599, %v740
    %v742 = vpop.f32.mrf.mxu0
    %743 = vdwg.mxu0
    %v744 = vmax.f32 %v670, 0.0
    %v745 = vmax.f32 %v672, 0.0
    %v746 = vmax.f32 %v741, 0.0
    %v747 = vld [vmem:[#allocation11] sm:$0xff]
    %v748 = vld [vmem:[#allocation11 + $0x8] sm:$0xff]
    %v749 = vld [vmem:[#allocation11 + $0x10] sm:$0xff]
    %v750 = vld [vmem:[#allocation11 + $0x18] sm:$0xff]
    %v751 = vld [vmem:[#allocation11 + $0x20] sm:$0xff]
    %v752 = vld [vmem:[#allocation11 + $0x28] sm:$0xff]
    %v753 = vld [vmem:[#allocation11 + $0x30] sm:$0xff]
    %v754 = vld [vmem:[#allocation11 + $0x38] sm:$0xff]
    %v755 = vld [vmem:[#allocation11 + $0x40] sm:$0xff]
    %v756 = vld [vmem:[#allocation11 + $0x48] sm:$0xff]
    %v757 = vld [vmem:[#allocation11 + $0x50] sm:$0xff]
    %v758 = vld [vmem:[#allocation11 + $0x58] sm:$0xff]
    %v759 = vld [vmem:[#allocation11 + $0x60] sm:$0xff]
    %v760 = vld [vmem:[#allocation11 + $0x68] sm:$0xff]
    %v761 = vld [vmem:[#allocation11 + $0x70] sm:$0xff]
    %v762 = vld [vmem:[#allocation11 + $0x78] sm:$0xff]
    %v763 = vld [vmem:[#allocation11 + $0x80] sm:$0xff]
    %v764 = vld [vmem:[#allocation11 + $0x88] sm:$0xff]
    %v765 = vld [vmem:[#allocation11 + $0x90] sm:$0xff]
    %v766 = vld [vmem:[#allocation11 + $0x98] sm:$0xff]
    %v767 = vld [vmem:[#allocation11 + $0xa0] sm:$0xff]
    %v768 = vld [vmem:[#allocation11 + $0xa8] sm:$0xff]
    %v769 = vld [vmem:[#allocation11 + $0xb0] sm:$0xff]
    %v770 = vld [vmem:[#allocation11 + $0xb8] sm:$0xff]
    %v771 = vld [vmem:[#allocation11 + $0xc0] sm:$0xff]
    %v772 = vld [vmem:[#allocation11 + $0xc8] sm:$0xff]
    %v773 = vld [vmem:[#allocation11 + $0xd0] sm:$0xff]
    %v774 = vld [vmem:[#allocation11 + $0xd8] sm:$0xff]
    %v775 = vld [vmem:[#allocation11 + $0xe0] sm:$0xff]
    %v776 = vld [vmem:[#allocation11 + $0xe8] sm:$0xff]
    %v777 = vld [vmem:[#allocation11 + $0xf0] sm:$0xff]
    %v778 = vld [vmem:[#allocation11 + $0xf8] sm:$0xff]
    %v779 = vld [vmem:[#allocation11 + $0x100] sm:$0xff]
    %v780 = vld [vmem:[#allocation11 + $0x108] sm:$0xff]
    %v781 = vld [vmem:[#allocation11 + $0x110] sm:$0xff]
    %v782 = vld [vmem:[#allocation11 + $0x118] sm:$0xff]
    %v783 = vld [vmem:[#allocation11 + $0x120] sm:$0xff]
    %v784 = vld [vmem:[#allocation11 + $0x128] sm:$0xff]
    %v785 = vld [vmem:[#allocation11 + $0x130] sm:$0xff]
    %v786 = vld [vmem:[#allocation11 + $0x138] sm:$0xff]
    %v787 = vld [vmem:[#allocation11 + $0x140] sm:$0xff]
    %v788 = vld [vmem:[#allocation11 + $0x148] sm:$0xff]
    %v789 = vld [vmem:[#allocation11 + $0x150] sm:$0xff]
    %v790 = vld [vmem:[#allocation11 + $0x158] sm:$0xff]
    %v791 = vld [vmem:[#allocation11 + $0x160] sm:$0xff]
    %v792 = vld [vmem:[#allocation11 + $0x168] sm:$0xff]
    %v793 = vld [vmem:[#allocation11 + $0x170] sm:$0xff]
    %v794 = vld [vmem:[#allocation11 + $0x178] sm:$0xff]
    %v795 = vld [vmem:[#allocation13 + $0x6] ss:$0 sm:$0xff]
    %796 = vmatprep.subr.mxu0 0.0
    %797 = vmatpush1.msra.mxu0 %v762
    %798 = vmatprep.subr.mxu0 0.0
    %799 = vmatpush1.msra.mxu0 %v761
    %800 = vmatprep.subr.mxu0 0.0
    %801 = vmatpush1.msra.mxu0 %v760
    %802 = vmatprep.subr.mxu0 0.0
    %803 = vmatpush1.msra.mxu0 %v759
    %804 = vmatprep.subr.mxu0 0.0
    %805 = vmatpush1.msra.mxu0 %v758
    %806 = vmatprep.subr.mxu0 0.0
    %807 = vmatpush1.msra.mxu0 %v757
    %808 = vmatprep.subr.mxu0 0.0
    %809 = vmatpush1.msra.mxu0 %v756
    %810 = vmatprep.subr.mxu0 0.0
    %811 = vmatpush1.msra.mxu0 %v755
    %812 = vmatprep.subr.mxu0 0.0
    %813 = vmatpush1.msra.mxu0 %v754
    %814 = vmatprep.subr.mxu0 0.0
    %815 = vmatpush1.msra.mxu0 %v753
    %816 = vmatprep.subr.mxu0 0.0
    %817 = vmatpush1.msra.mxu0 %v752
    %818 = vmatprep.subr.mxu0 0.0
    %819 = vmatpush1.msra.mxu0 %v751
    %820 = vmatprep.subr.mxu0 0.0
    %821 = vmatpush1.msra.mxu0 %v750
    %822 = vmatprep.subr.mxu0 0.0
    %823 = vmatpush1.msra.mxu0 %v749
    %824 = vmatprep.subr.mxu0 0.0
    %825 = vmatpush1.msra.mxu0 %v748
    %826 = vmatprep.subr.mxu0 0.0
    %827 = vmatpush1.msra.mxu0 %v747
    %828 = vmatprep.subr.mxu0 0.0
    %829 = vmatpush2.msra.mxu0 %v778
    %830 = vmatprep.subr.mxu0 0.0
    %831 = vmatpush2.msra.mxu0 %v777
    %832 = vmatprep.subr.mxu0 0.0
    %833 = vmatpush2.msra.mxu0 %v776
    %834 = vmatprep.subr.mxu0 0.0
    %835 = vmatpush2.msra.mxu0 %v775
    %836 = vmatprep.subr.mxu0 0.0
    %837 = vmatpush2.msra.mxu0 %v774
    %838 = vmatprep.subr.mxu0 0.0
    %839 = vmatpush2.msra.mxu0 %v773
    %840 = vmatprep.subr.mxu0 0.0
    %841 = vmatpush2.msra.mxu0 %v772
    %842 = vmatprep.subr.mxu0 0.0
    %843 = vmatpush2.msra.mxu0 %v771
    %844 = vmatprep.subr.mxu0 0.0
    %845 = vmatpush2.msra.mxu0 %v770
    %846 = vmatprep.subr.mxu0 0.0
    %847 = vmatpush2.msra.mxu0 %v769
    %848 = vmatprep.subr.mxu0 0.0
    %849 = vmatpush2.msra.mxu0 %v768
    %850 = vmatprep.subr.mxu0 0.0
    %851 = vmatpush2.msra.mxu0 %v767
    %852 = vmatprep.subr.mxu0 0.0
    %853 = vmatpush2.msra.mxu0 %v766
    %854 = vmatprep.subr.mxu0 0.0
    %855 = vmatpush2.msra.mxu0 %v765
    %856 = vmatprep.subr.mxu0 0.0
    %857 = vmatpush2.msra.mxu0 %v764
    %858 = vmatprep.subr.mxu0 0.0
    %859 = vmatpush2.msra.mxu0 %v763
    %860 = vmatprep.mubr.f32.mxu0 %v745
    %861 = vmatmul.mubr.f32.gmra.mxu0 %v744
    %v862 = vpop.f32.mrf.mxu0
    %v863 = vadd.f32 %v795, %v862
    %v864 = vpop.f32.mrf.mxu0
    %865 = vdwg.mxu0
    %866 = vmatprep.subr.mxu0 0.0
    %867 = vmatpush1.msra.mxu0 %v794
    %868 = vmatprep.subr.mxu0 0.0
    %869 = vmatpush1.msra.mxu0 %v793
    %870 = vmatprep.subr.mxu0 0.0
    %871 = vmatpush1.msra.mxu0 %v792
    %872 = vmatprep.subr.mxu0 0.0
    %873 = vmatpush1.msra.mxu0 %v791
    %874 = vmatprep.subr.mxu0 0.0
    %875 = vmatpush1.msra.mxu0 %v790
    %876 = vmatprep.subr.mxu0 0.0
    %877 = vmatpush1.msra.mxu0 %v789
    %878 = vmatprep.subr.mxu0 0.0
    %879 = vmatpush1.msra.mxu0 %v788
    %880 = vmatprep.subr.mxu0 0.0
    %881 = vmatpush1.msra.mxu0 %v787
    %882 = vmatprep.subr.mxu0 0.0
    %883 = vmatpush1.msra.mxu0 %v786
    %884 = vmatprep.subr.mxu0 0.0
    %885 = vmatpush1.msra.mxu0 %v785
    %886 = vmatprep.subr.mxu0 0.0
    %887 = vmatpush1.msra.mxu0 %v784
    %888 = vmatprep.subr.mxu0 0.0
    %889 = vmatpush1.msra.mxu0 %v783
    %890 = vmatprep.subr.mxu0 0.0
    %891 = vmatpush1.msra.mxu0 %v782
    %892 = vmatprep.subr.mxu0 0.0
    %893 = vmatpush1.msra.mxu0 %v781
    %894 = vmatprep.subr.mxu0 0.0
    %895 = vmatpush1.msra.mxu0 %v780
    %896 = vmatprep.subr.mxu0 0.0
    %897 = vmatpush1.msra.mxu0 %v779
    %898 = vmatprep.subr.mxu0 0.0
    %899 = vmatpush2.msra.mxu0 0.0
    %900 = vmatprep.subr.mxu0 0.0
    %901 = vmatpush2.msra.mxu0 0.0
    %902 = vmatprep.subr.mxu0 0.0
    %903 = vmatpush2.msra.mxu0 0.0
    %904 = vmatprep.subr.mxu0 0.0
    %905 = vmatpush2.msra.mxu0 0.0
    %906 = vmatprep.subr.mxu0 0.0
    %907 = vmatpush2.msra.mxu0 0.0
    %908 = vmatprep.subr.mxu0 0.0
    %909 = vmatpush2.msra.mxu0 0.0
    %910 = vmatprep.subr.mxu0 0.0
    %911 = vmatpush2.msra.mxu0 0.0
    %912 = vmatprep.subr.mxu0 0.0
    %913 = vmatpush2.msra.mxu0 0.0
    %914 = vmatprep.subr.mxu0 0.0
    %915 = vmatpush2.msra.mxu0 0.0
    %916 = vmatprep.subr.mxu0 0.0
    %917 = vmatpush2.msra.mxu0 0.0
    %918 = vmatprep.subr.mxu0 0.0
    %919 = vmatpush2.msra.mxu0 0.0
    %920 = vmatprep.subr.mxu0 0.0
    %921 = vmatpush2.msra.mxu0 0.0
    %922 = vmatprep.subr.mxu0 0.0
    %923 = vmatpush2.msra.mxu0 0.0
    %924 = vmatprep.subr.mxu0 0.0
    %925 = vmatpush2.msra.mxu0 0.0
    %926 = vmatprep.subr.mxu0 0.0
    %927 = vmatpush2.msra.mxu0 0.0
    %928 = vmatprep.subr.mxu0 0.0
    %929 = vmatpush2.msra.mxu0 0.0
    %930 = vmatprep.mubr.f32.mxu0 0.0
    %931 = vmatmul.mubr.f32.gmra.mxu0 %v746
    %v932 = vpop.f32.mrf.mxu0
    %v933 = vadd.f32 %v863, %v932
    %v934 = vpop.f32.mrf.mxu0
    %935 = vdwg.mxu0
    %v936 = vlaneseq
    %v937 = vand.u32 %v936, 127
    %vm938 = vcmp.lt.s32.totalorder %v937, 8
    %vm939 = vcmp.ge.s32.totalorder %v937, 8
    %vm940 = vcmp.lt.s32.totalorder %v937, 12
    %vm941 = vmand %vm939, %vm940
    %vm942 = vcmp.eq.s32.totalorder %v937, 12
    %vm943 = vcmp.eq.s32.totalorder %v937, 13
    %v944 = vsel %vm938, %v933, -1e+30
    %945 = vmax.xlane.f32.xlu0 %v944
    %v946 = vpop.xlane.xlu0 %945
    %v947 = vsel %vm941, %v933, -1e+30
    %948 = vmax.xlane.f32.xlu0 %v947
    %v949 = vpop.xlane.xlu0 %948
    %v950 = vmax.f32 %v933, 0.0
    %v951 = vmul.f32 %v950, 2.0
    %v952 = vsel %vm941, %v949, %v951
    %v953 = vsel %vm938, %v946, %v952
    %v954 = vsub.f32 %v933, %v953
    %v955 = vmul.f32 %v954, 1.442695
    %v956 = vpow.pop %v955
    %v957 = vsel %vm938, %v956, 0.0
    %958 = vadd.xlane.f32.xlu0 %v957
    %v959 = vpop.xlane.xlu0 %958
    %v960 = vsel %vm941, %v956, 0.0
    %961 = vadd.xlane.f32.xlu0 %v960
    %v962 = vpop.xlane.xlu0 %961
    %v963 = vadd.f32 %v956, 1.0
    %v964 = vlog2.pop %v963
    %v965 = vmul.f32 %v964, 0.6931472
    %v966 = vadd.f32 %v950, %v965
    %vm967 = vcmp.ge.f32.partialorder %v933, 0.0
    %v968 = vsel %vm967, 1.0, %v956
    %v969 = vsel %vm943, %v966, 0.0
    %v970 = vsel %vm942, %v968, %v969
    %v971 = vsel %vm940, %v956, %v970
    %v972 = vsel %vm942, %v963, 1.0
    %v973 = vsel %vm941, %v962, %v972
    %v974 = vsel %vm938, %v959, %v973
    %v975 = vrcp.pop %v974
    %v976 = vmul.f32 %v971, %v975
    %v977 = vmul.f32 %v976, 2.0
    %v978 = vadd.f32 %v977, 1e-10
    %v979 = vsel %vm942, %v978, %v976
    %980 = vst [vmem:[#allocation14] sm:$0xff] %v979
    // Predicated region
    $region58: #{tpu_custom_call.1} parent=1 // pred_check
      _
    $region59: #{tpu_custom_call.1} parent=1 // pred_check_branch
      %982 = sbr.rel (0) target = $region61
    $region60: #{tpu_custom_call.1} parent=1 // pred_region
      %s984 = ssub.s32 128, 128
      %985 = vsyncadd [#allocation4], %s984
      %s987 = sshll.u32 [#allocation14], 4
      %s988 = int_to_ptr.vmem [resolvable:$true] %s987
      %990 = dma.vmem_to_hbm [thread:$0]  %s988, 128, %s7, [#allocation4]
    $region61: #{tpu_custom_call.1} parent=1 // pred_fallthru
      _
    // Predicated region
    $region62: #{tpu_custom_call.1} parent=1 // pred_check
      _
    $region63: #{tpu_custom_call.1} parent=1 // pred_check_branch
      %992 = sbr.rel (0) target = $region65
    $region64: #{tpu_custom_call.1} parent=1 // pred_region
      %993 = dma.done [#allocation4], 128
    $region65: #{tpu_custom_call.1} parent=1 // pred_fallthru
      _
    %994 = vsyncpa [#allocation3], 1
    %995 = vsyncpa [#allocation6], 1
    %996 = vsyncpa [#allocation9], 1
    %997 = vsyncpa [#allocation12], 1
    %998 = vsyncpa [#allocation4], 1

</llo_original>
